<compile_context>
chip_gen: v7x
topology: tpu7x:2x2x1
jax: 0.10.0
libtpu: 0.0.40
codegen_flags: <defaults>
</compile_context>

<pallas_src>
import jax
import jax.numpy as jnp
from jax.experimental import pallas as pl
from jax.experimental.pallas import tpu as pltpu

B = 2
H = W = 28            # view(-1, 845) implies 28x28 inputs (5 * 13 * 13 = 845)
C_IN = 1
C_OUT = 5
KH = KW = 3
CONV_OUT = 26
POOL = 13
N_POS = POOL * POOL       # 169 pooled spatial positions
N_WIN = 4                 # 2x2 pooling-window positions
N_TAP = KH * KW           # 9 conv taps
C_STRIDE = 256            # lane-aligned per-channel block in the FC scratch
FC_IN = C_OUT * N_POS     # 845
FC_OUT = 10
EPS = 1e-5


# ---------------------------------------------------------------------------
# Fused Pallas kernel
# ---------------------------------------------------------------------------
def fused_netbn_kernel(patches_ref, cw_ref, gamma_ref, beta_ref,
                       fcw_ref, fcb_ref, out_ref, scr_ref):
    """Fused conv -> BN (batch stats) -> ReLU -> 2x2 maxpool -> FC.

    patches_ref: (9, 4B, 169) VMEM  tap k = ki*3+kj (outer),
                                    sublane = (di*2+dj)*B + b,
                                    lane    = i*13 + j,
                                    value   = x[b, 2i+di+ki, 2j+dj+kj]
    cw_ref:      (45,)  SMEM        conv weight, index = c*9 + ki*3 + kj
    gamma_ref:   (5,)   SMEM
    beta_ref:    (5,)   SMEM
    fcw_ref:     (1280, 10) VMEM    channel-blocked, zero-padded FC weight
    fcb_ref:     (1, 10) VMEM
    out_ref:     (B, 10) VMEM
    scr_ref:     (4B, 1280) VMEM    pooled activations, channel-blocked
    """
    n_sub = patches_ref.shape[1]              # 4 * B
    nb = n_sub // N_WIN                       # B
    inv_n = 1.0 / float(n_sub * N_POS)        # conv bias omitted: cancels in BN

    # Zero the scratch once so the 87 pad lanes per channel block read as 0.
    scr_ref[...] = jnp.zeros_like(scr_ref)

    # Hoist the 9 packed (4B, 169) patch slabs: reused by all 5 channels.
    taps = [patches_ref[k] for k in range(N_TAP)]

    for c in range(C_OUT):
        # ---- conv: 9-tap VPU FMA over the full packed slab ----
        z = taps[0] * cw_ref[c * N_TAP]
        for k in range(1, N_TAP):
            z = z + taps[k] * cw_ref[c * N_TAP + k]          # (4B, 169)

        # ---- BatchNorm2d: training-mode batch stats, biased two-pass var ----
        mean = jnp.sum(z, keepdims=True) * inv_n             # (1, 1)
        d = z - mean
        var = jnp.sum(d * d, keepdims=True) * inv_n          # (1, 1)
        scale = gamma_ref[c] * jax.lax.rsqrt(var + EPS)      # (1, 1)
        shift = beta_ref[c] - mean * scale                   # (1, 1)

        # ---- affine BN + ReLU on the packed slab ----
        y = jnp.maximum(z * scale + shift, 0.0)              # (4B, 169)

        # ---- 2x2 max-pool: two sublane rolls (XLU) + max; rows 0..B-1 then
        #      hold the full 4-window max for each batch element ----
        t = jnp.maximum(y, pltpu.roll(y, shift=2 * nb, axis=0))
        pooled = jnp.maximum(t, pltpu.roll(t, shift=nb, axis=0))

        # ---- stash into the lane-aligned, channel-blocked FC scratch ----
        scr_ref[:, c * C_STRIDE: c * C_STRIDE + N_POS] = pooled

    # ---- single fused FC: one (4B, 1280) x (1280, 10) MXU dot ----
    res = jnp.dot(scr_ref[...], fcw_ref[...],
                  preferred_element_type=jnp.float32)        # (4B, 10)
    out_ref[...] = res[:nb, :] + fcb_ref[...]


# ---------------------------------------------------------------------------
# JAX glue
# ---------------------------------------------------------------------------
def _extract_pool_grouped_patches(x):
    """(B, 1, 28, 28) -> (9, 4B, 169) im2col patches, pool-window packed."""
    b = x.shape[0]
    x2 = x[:, 0]                                               # (B, 28, 28)
    cols = [x2[:, ki:ki + CONV_OUT, kj:kj + CONV_OUT]
            for ki in range(KH) for kj in range(KW)]           # 9 x (B, 26, 26)
    pat = jnp.stack(cols, axis=0)                              # (9, B, 26, 26)
    pat = pat.reshape(N_TAP, b, POOL, 2, POOL, 2)              # (k,b,i,di,j,dj)
    pat = pat.transpose(0, 3, 5, 1, 2, 4)                      # (k,di,dj,b,i,j)
    return pat.reshape(N_TAP, N_WIN * b, N_POS)                # (9, 4B, 169)


def _pack_fc_weight(fc_w):
    """(10, 845) -> (1280, 10): channel-blocked, zero-padded to 256 lanes/ch."""
    w = fc_w.reshape(FC_OUT, C_OUT, N_POS).transpose(1, 2, 0)     # (5, 169, 10)
    w = jnp.pad(w, ((0, 0), (0, C_STRIDE - N_POS), (0, 0)))       # (5, 256, 10)
    return w.reshape(C_OUT * C_STRIDE, FC_OUT)                    # (1280, 10)


def netbn_forward(x, params):
    conv_w, conv_b, gamma, beta, fc_w, fc_b = params
    del conv_b                      # bias before training-mode BN cancels exactly
    assert x.shape[1:] == (C_IN, H, W), x.shape
    b = x.shape[0]

    patches = _extract_pool_grouped_patches(x)           # (9, 4B, 169)
    cw = conv_w.reshape(C_OUT * KH * KW)                  # (45,)
    fcw = _pack_fc_weight(fc_w)                           # (1280, 10)

    return pl.pallas_call(
        fused_netbn_kernel,
        out_shape=jax.ShapeDtypeStruct((b, FC_OUT), jnp.float32),
        in_specs=[
            pl.BlockSpec(memory_space=pltpu.MemorySpace.VMEM),   # patches
            pl.BlockSpec(memory_space=pltpu.MemorySpace.SMEM),   # conv weight
            pl.BlockSpec(memory_space=pltpu.MemorySpace.SMEM),   # gamma
            pl.BlockSpec(memory_space=pltpu.MemorySpace.SMEM),   # beta
            pl.BlockSpec(memory_space=pltpu.MemorySpace.VMEM),   # fc weight
            pl.BlockSpec(memory_space=pltpu.MemorySpace.VMEM),   # fc bias
        ],
        out_specs=pl.BlockSpec(memory_space=pltpu.MemorySpace.VMEM),
        scratch_shapes=[pltpu.VMEM((N_WIN * b, C_OUT * C_STRIDE), jnp.float32)],
    )(patches, cw, gamma, beta, fcw, fc_b.reshape(1, FC_OUT))


def reference_forward(x, params):
    """Pure-JAX reference of NetBN.forward (training-mode BatchNorm)."""
    conv_w, conv_b, gamma, beta, fc_w, fc_b = params
    y = jax.lax.conv_general_dilated(
        x, conv_w, (1, 1), "VALID",
        dimension_numbers=("NCHW", "OIHW", "NCHW"))
    y = y + conv_b.reshape(1, -1, 1, 1)
    mean = jnp.mean(y, axis=(0, 2, 3), keepdims=True)
    var = jnp.var(y, axis=(0, 2, 3), keepdims=True)
    y = (y - mean) / jnp.sqrt(var + EPS)
    y = y * gamma.reshape(1, -1, 1, 1) + beta.reshape(1, -1, 1, 1)
    y = jnp.maximum(y, 0.0)
    b = x.shape[0]
    y = y.reshape(b, C_OUT, POOL, 2, POOL, 2).max(axis=(3, 5))
    return y.reshape(b, FC_IN) @ fc_w.T + fc_b


if __name__ == "__main__":
    key = jax.random.PRNGKey(0)
    kx, kw, kb, kg, kbe, kfw, kfb = jax.random.split(key, 7)

    x = jax.random.normal(kx, (B, C_IN, H, W), dtype=jnp.float32)

    conv_w = 0.1 * jax.random.normal(kw, (C_OUT, C_IN, KH, KW), dtype=jnp.float32)
    conv_b = 0.1 * jax.random.normal(kb, (C_OUT,), dtype=jnp.float32)
    gamma = 1.0 + 0.1 * jax.random.normal(kg, (C_OUT,), dtype=jnp.float32)
    beta = 0.1 * jax.random.normal(kbe, (C_OUT,), dtype=jnp.float32)
    fc_w = 0.05 * jax.random.normal(kfw, (FC_OUT, FC_IN), dtype=jnp.float32)
    fc_b = 0.05 * jax.random.normal(kfb, (FC_OUT,), dtype=jnp.float32)

    params = (conv_w, conv_b, gamma, beta, fc_w, fc_b)

    out = jax.block_until_ready(jax.jit(netbn_forward)(x, params))
    ref = jax.block_until_ready(reference_forward(x, params))

    assert out.shape == (B, FC_OUT), out.shape
    err = jnp.max(jnp.abs(out - ref))
    assert jnp.allclose(out, ref, atol=1e-3, rtol=1e-3), \
        f"mismatch: max abs err {err}"

    print("KERNEL_OK")
</pallas_src>

<mosaic_0001>
module attributes {stable_mosaic.version = 11 : i64} {
  func.func @fused_netbn_kernel(%arg0: memref<9x8x169xf32, #tpu.memory_space<vmem>>, %arg1: memref<45xf32, #tpu.memory_space<smem>>, %arg2: memref<5xf32, #tpu.memory_space<smem>>, %arg3: memref<5xf32, #tpu.memory_space<smem>>, %arg4: memref<1280x10xf32, #tpu.memory_space<vmem>>, %arg5: memref<1x10xf32, #tpu.memory_space<vmem>>, %arg6: memref<2x10xf32, #tpu.memory_space<vmem>>, %arg7: memref<8x1280xf32, #tpu.memory_space<vmem>>) attributes {dimension_semantics = [], scalar_prefetch = 0 : i64, scratch_operands = 1 : i64, tpu.core_type = #tpu.core_type<tc>} {
    %cst = arith.constant 0.000000e+00 : f32
    %0 = vector.broadcast %cst : f32 to vector<8x1280xf32>
    %c0 = arith.constant 0 : index
    %c0_0 = arith.constant 0 : index
    %1 = vector.load %arg7[%c0, %c0_0] : memref<8x1280xf32, #tpu.memory_space<vmem>>, vector<8x1280xf32>
    tpu.vector_store %arg7[%c0, %c0_0], %0 {strides = array<i32>} : memref<8x1280xf32, #tpu.memory_space<vmem>>, vector<8x1280xf32>,
    %c0_1 = arith.constant 0 : index
    %c0_2 = arith.constant 0 : index
    %c0_3 = arith.constant 0 : index
    %2 = vector.load %arg0[%c0_1, %c0_2, %c0_3] : memref<9x8x169xf32, #tpu.memory_space<vmem>>, vector<1x8x169xf32>
    %3 = vector.shape_cast %2 : vector<1x8x169xf32> to vector<8x169xf32>
    %c1 = arith.constant 1 : index
    %c0_4 = arith.constant 0 : index
    %c0_5 = arith.constant 0 : index
    %4 = vector.load %arg0[%c1, %c0_4, %c0_5] : memref<9x8x169xf32, #tpu.memory_space<vmem>>, vector<1x8x169xf32>
    %5 = vector.shape_cast %4 : vector<1x8x169xf32> to vector<8x169xf32>
    %c2 = arith.constant 2 : index
    %c0_6 = arith.constant 0 : index
    %c0_7 = arith.constant 0 : index
    %6 = vector.load %arg0[%c2, %c0_6, %c0_7] : memref<9x8x169xf32, #tpu.memory_space<vmem>>, vector<1x8x169xf32>
    %7 = vector.shape_cast %6 : vector<1x8x169xf32> to vector<8x169xf32>
    %c3 = arith.constant 3 : index
    %c0_8 = arith.constant 0 : index
    %c0_9 = arith.constant 0 : index
    %8 = vector.load %arg0[%c3, %c0_8, %c0_9] : memref<9x8x169xf32, #tpu.memory_space<vmem>>, vector<1x8x169xf32>
    %9 = vector.shape_cast %8 : vector<1x8x169xf32> to vector<8x169xf32>
    %c4 = arith.constant 4 : index
    %c0_10 = arith.constant 0 : index
    %c0_11 = arith.constant 0 : index
    %10 = vector.load %arg0[%c4, %c0_10, %c0_11] : memref<9x8x169xf32, #tpu.memory_space<vmem>>, vector<1x8x169xf32>
    %11 = vector.shape_cast %10 : vector<1x8x169xf32> to vector<8x169xf32>
    %c5 = arith.constant 5 : index
    %c0_12 = arith.constant 0 : index
    %c0_13 = arith.constant 0 : index
    %12 = vector.load %arg0[%c5, %c0_12, %c0_13] : memref<9x8x169xf32, #tpu.memory_space<vmem>>, vector<1x8x169xf32>
    %13 = vector.shape_cast %12 : vector<1x8x169xf32> to vector<8x169xf32>
    %c6 = arith.constant 6 : index
    %c0_14 = arith.constant 0 : index
    %c0_15 = arith.constant 0 : index
    %14 = vector.load %arg0[%c6, %c0_14, %c0_15] : memref<9x8x169xf32, #tpu.memory_space<vmem>>, vector<1x8x169xf32>
    %15 = vector.shape_cast %14 : vector<1x8x169xf32> to vector<8x169xf32>
    %c7 = arith.constant 7 : index
    %c0_16 = arith.constant 0 : index
    %c0_17 = arith.constant 0 : index
    %16 = vector.load %arg0[%c7, %c0_16, %c0_17] : memref<9x8x169xf32, #tpu.memory_space<vmem>>, vector<1x8x169xf32>
    %17 = vector.shape_cast %16 : vector<1x8x169xf32> to vector<8x169xf32>
    %c8 = arith.constant 8 : index
    %c0_18 = arith.constant 0 : index
    %c0_19 = arith.constant 0 : index
    %18 = vector.load %arg0[%c8, %c0_18, %c0_19] : memref<9x8x169xf32, #tpu.memory_space<vmem>>, vector<1x8x169xf32>
    %19 = vector.shape_cast %18 : vector<1x8x169xf32> to vector<8x169xf32>
    %c0_20 = arith.constant 0 : index
    %20 = memref.load %arg1[%c0_20] : memref<45xf32, #tpu.memory_space<smem>>
    %21 = vector.broadcast %20 : f32 to vector<8x169xf32>
    %22 = arith.mulf %3, %21 : vector<8x169xf32>
    %c1_21 = arith.constant 1 : index
    %23 = memref.load %arg1[%c1_21] : memref<45xf32, #tpu.memory_space<smem>>
    %24 = vector.broadcast %23 : f32 to vector<8x169xf32>
    %25 = arith.mulf %5, %24 : vector<8x169xf32>
    %26 = arith.addf %22, %25 : vector<8x169xf32>
    %c2_22 = arith.constant 2 : index
    %27 = memref.load %arg1[%c2_22] : memref<45xf32, #tpu.memory_space<smem>>
    %28 = vector.broadcast %27 : f32 to vector<8x169xf32>
    %29 = arith.mulf %7, %28 : vector<8x169xf32>
    %30 = arith.addf %26, %29 : vector<8x169xf32>
    %c3_23 = arith.constant 3 : index
    %31 = memref.load %arg1[%c3_23] : memref<45xf32, #tpu.memory_space<smem>>
    %32 = vector.broadcast %31 : f32 to vector<8x169xf32>
    %33 = arith.mulf %9, %32 : vector<8x169xf32>
    %34 = arith.addf %30, %33 : vector<8x169xf32>
    %c4_24 = arith.constant 4 : index
    %35 = memref.load %arg1[%c4_24] : memref<45xf32, #tpu.memory_space<smem>>
    %36 = vector.broadcast %35 : f32 to vector<8x169xf32>
    %37 = arith.mulf %11, %36 : vector<8x169xf32>
    %38 = arith.addf %34, %37 : vector<8x169xf32>
    %c5_25 = arith.constant 5 : index
    %39 = memref.load %arg1[%c5_25] : memref<45xf32, #tpu.memory_space<smem>>
    %40 = vector.broadcast %39 : f32 to vector<8x169xf32>
    %41 = arith.mulf %13, %40 : vector<8x169xf32>
    %42 = arith.addf %38, %41 : vector<8x169xf32>
    %c6_26 = arith.constant 6 : index
    %43 = memref.load %arg1[%c6_26] : memref<45xf32, #tpu.memory_space<smem>>
    %44 = vector.broadcast %43 : f32 to vector<8x169xf32>
    %45 = arith.mulf %15, %44 : vector<8x169xf32>
    %46 = arith.addf %42, %45 : vector<8x169xf32>
    %c7_27 = arith.constant 7 : index
    %47 = memref.load %arg1[%c7_27] : memref<45xf32, #tpu.memory_space<smem>>
    %48 = vector.broadcast %47 : f32 to vector<8x169xf32>
    %49 = arith.mulf %17, %48 : vector<8x169xf32>
    %50 = arith.addf %46, %49 : vector<8x169xf32>
    %c8_28 = arith.constant 8 : index
    %51 = memref.load %arg1[%c8_28] : memref<45xf32, #tpu.memory_space<smem>>
    %52 = vector.broadcast %51 : f32 to vector<8x169xf32>
    %53 = arith.mulf %19, %52 : vector<8x169xf32>
    %54 = arith.addf %50, %53 : vector<8x169xf32>
    %55 = vector.shape_cast %54 : vector<8x169xf32> to vector<1x8x169xf32>
    %cst_29 = arith.constant dense<0.000000e+00> : vector<1xf32>
    %56 = vector.multi_reduction <add>, %55, %cst_29 [1, 2] : vector<1x8x169xf32> to vector<1xf32>
    %57 = vector.shape_cast %56 : vector<1xf32> to vector<1x1x1xf32>
    %58 = vector.extract %57[0, 0, 0] : f32 from vector<1x1x1xf32>
    %59 = vector.broadcast %58 : f32 to vector<1x1xf32>
    %cst_30 = arith.constant 7.396450e-04 : f32
    %60 = vector.broadcast %cst_30 : f32 to vector<1x1xf32>
    %61 = arith.mulf %59, %60 : vector<1x1xf32>
    %62 = vector.broadcast %61 : vector<1x1xf32> to vector<8x169xf32>
    %63 = arith.subf %54, %62 : vector<8x169xf32>
    %64 = arith.mulf %63, %63 : vector<8x169xf32>
    %65 = vector.shape_cast %64 : vector<8x169xf32> to vector<1x8x169xf32>
    %cst_31 = arith.constant dense<0.000000e+00> : vector<1xf32>
    %66 = vector.multi_reduction <add>, %65, %cst_31 [1, 2] : vector<1x8x169xf32> to vector<1xf32>
    %67 = vector.shape_cast %66 : vector<1xf32> to vector<1x1x1xf32>
    %68 = vector.extract %67[0, 0, 0] : f32 from vector<1x1x1xf32>
    %69 = vector.broadcast %68 : f32 to vector<1x1xf32>
    %cst_32 = arith.constant 7.396450e-04 : f32
    %70 = vector.broadcast %cst_32 : f32 to vector<1x1xf32>
    %71 = arith.mulf %69, %70 : vector<1x1xf32>
    %c0_33 = arith.constant 0 : index
    %72 = memref.load %arg2[%c0_33] : memref<5xf32, #tpu.memory_space<smem>>
    %cst_34 = arith.constant 9.99999974E-6 : f32
    %73 = vector.broadcast %cst_34 : f32 to vector<1x1xf32>
    %74 = arith.addf %71, %73 : vector<1x1xf32>
    %75 = math.rsqrt %74 : vector<1x1xf32>
    %76 = vector.broadcast %72 : f32 to vector<1x1xf32>
    %77 = arith.mulf %76, %75 : vector<1x1xf32>
    %c0_35 = arith.constant 0 : index
    %78 = memref.load %arg3[%c0_35] : memref<5xf32, #tpu.memory_space<smem>>
    %79 = arith.mulf %61, %77 : vector<1x1xf32>
    %80 = vector.broadcast %78 : f32 to vector<1x1xf32>
    %81 = arith.subf %80, %79 : vector<1x1xf32>
    %82 = vector.broadcast %77 : vector<1x1xf32> to vector<8x169xf32>
    %83 = arith.mulf %54, %82 : vector<8x169xf32>
    %84 = vector.broadcast %81 : vector<1x1xf32> to vector<8x169xf32>
    %85 = arith.addf %83, %84 : vector<8x169xf32>
    %cst_36 = arith.constant 0.000000e+00 : f32
    %86 = vector.broadcast %cst_36 : f32 to vector<8x169xf32>
    %87 = arith.maximumf %85, %86 : vector<8x169xf32>
    %c4_i32 = arith.constant 4 : i32
    %88 = tpu.dynamic_rotate %87 by %c4_i32 dim 0 : vector<8x169xf32>, i32 -> vector<8x169xf32>
    %89 = arith.maximumf %87, %88 : vector<8x169xf32>
    %c2_i32 = arith.constant 2 : i32
    %90 = tpu.dynamic_rotate %89 by %c2_i32 dim 0 : vector<8x169xf32>, i32 -> vector<8x169xf32>
    %91 = arith.maximumf %89, %90 : vector<8x169xf32>
    %c0_37 = arith.constant 0 : index
    %c0_38 = arith.constant 0 : index
    %92 = vector.load %arg7[%c0_37, %c0_38] : memref<8x1280xf32, #tpu.memory_space<vmem>>, vector<8x169xf32>
    tpu.vector_store %arg7[%c0_37, %c0_38], %91 {strides = array<i32>} : memref<8x1280xf32, #tpu.memory_space<vmem>>, vector<8x169xf32>,
    %c9 = arith.constant 9 : index
    %93 = memref.load %arg1[%c9] : memref<45xf32, #tpu.memory_space<smem>>
    %94 = vector.broadcast %93 : f32 to vector<8x169xf32>
    %95 = arith.mulf %3, %94 : vector<8x169xf32>
    %c10 = arith.constant 10 : index
    %96 = memref.load %arg1[%c10] : memref<45xf32, #tpu.memory_space<smem>>
    %97 = vector.broadcast %96 : f32 to vector<8x169xf32>
    %98 = arith.mulf %5, %97 : vector<8x169xf32>
    %99 = arith.addf %95, %98 : vector<8x169xf32>
    %c11 = arith.constant 11 : index
    %100 = memref.load %arg1[%c11] : memref<45xf32, #tpu.memory_space<smem>>
    %101 = vector.broadcast %100 : f32 to vector<8x169xf32>
    %102 = arith.mulf %7, %101 : vector<8x169xf32>
    %103 = arith.addf %99, %102 : vector<8x169xf32>
    %c12 = arith.constant 12 : index
    %104 = memref.load %arg1[%c12] : memref<45xf32, #tpu.memory_space<smem>>
    %105 = vector.broadcast %104 : f32 to vector<8x169xf32>
    %106 = arith.mulf %9, %105 : vector<8x169xf32>
    %107 = arith.addf %103, %106 : vector<8x169xf32>
    %c13 = arith.constant 13 : index
    %108 = memref.load %arg1[%c13] : memref<45xf32, #tpu.memory_space<smem>>
    %109 = vector.broadcast %108 : f32 to vector<8x169xf32>
    %110 = arith.mulf %11, %109 : vector<8x169xf32>
    %111 = arith.addf %107, %110 : vector<8x169xf32>
    %c14 = arith.constant 14 : index
    %112 = memref.load %arg1[%c14] : memref<45xf32, #tpu.memory_space<smem>>
    %113 = vector.broadcast %112 : f32 to vector<8x169xf32>
    %114 = arith.mulf %13, %113 : vector<8x169xf32>
    %115 = arith.addf %111, %114 : vector<8x169xf32>
    %c15 = arith.constant 15 : index
    %116 = memref.load %arg1[%c15] : memref<45xf32, #tpu.memory_space<smem>>
    %117 = vector.broadcast %116 : f32 to vector<8x169xf32>
    %118 = arith.mulf %15, %117 : vector<8x169xf32>
    %119 = arith.addf %115, %118 : vector<8x169xf32>
    %c16 = arith.constant 16 : index
    %120 = memref.load %arg1[%c16] : memref<45xf32, #tpu.memory_space<smem>>
    %121 = vector.broadcast %120 : f32 to vector<8x169xf32>
    %122 = arith.mulf %17, %121 : vector<8x169xf32>
    %123 = arith.addf %119, %122 : vector<8x169xf32>
    %c17 = arith.constant 17 : index
    %124 = memref.load %arg1[%c17] : memref<45xf32, #tpu.memory_space<smem>>
    %125 = vector.broadcast %124 : f32 to vector<8x169xf32>
    %126 = arith.mulf %19, %125 : vector<8x169xf32>
    %127 = arith.addf %123, %126 : vector<8x169xf32>
    %128 = vector.shape_cast %127 : vector<8x169xf32> to vector<1x8x169xf32>
    %cst_39 = arith.constant dense<0.000000e+00> : vector<1xf32>
    %129 = vector.multi_reduction <add>, %128, %cst_39 [1, 2] : vector<1x8x169xf32> to vector<1xf32>
    %130 = vector.shape_cast %129 : vector<1xf32> to vector<1x1x1xf32>
    %131 = vector.extract %130[0, 0, 0] : f32 from vector<1x1x1xf32>
    %132 = vector.broadcast %131 : f32 to vector<1x1xf32>
    %cst_40 = arith.constant 7.396450e-04 : f32
    %133 = vector.broadcast %cst_40 : f32 to vector<1x1xf32>
    %134 = arith.mulf %132, %133 : vector<1x1xf32>
    %135 = vector.broadcast %134 : vector<1x1xf32> to vector<8x169xf32>
    %136 = arith.subf %127, %135 : vector<8x169xf32>
    %137 = arith.mulf %136, %136 : vector<8x169xf32>
    %138 = vector.shape_cast %137 : vector<8x169xf32> to vector<1x8x169xf32>
    %cst_41 = arith.constant dense<0.000000e+00> : vector<1xf32>
    %139 = vector.multi_reduction <add>, %138, %cst_41 [1, 2] : vector<1x8x169xf32> to vector<1xf32>
    %140 = vector.shape_cast %139 : vector<1xf32> to vector<1x1x1xf32>
    %141 = vector.extract %140[0, 0, 0] : f32 from vector<1x1x1xf32>
    %142 = vector.broadcast %141 : f32 to vector<1x1xf32>
    %cst_42 = arith.constant 7.396450e-04 : f32
    %143 = vector.broadcast %cst_42 : f32 to vector<1x1xf32>
    %144 = arith.mulf %142, %143 : vector<1x1xf32>
    %c1_43 = arith.constant 1 : index
    %145 = memref.load %arg2[%c1_43] : memref<5xf32, #tpu.memory_space<smem>>
    %cst_44 = arith.constant 9.99999974E-6 : f32
    %146 = vector.broadcast %cst_44 : f32 to vector<1x1xf32>
    %147 = arith.addf %144, %146 : vector<1x1xf32>
    %148 = math.rsqrt %147 : vector<1x1xf32>
    %149 = vector.broadcast %145 : f32 to vector<1x1xf32>
    %150 = arith.mulf %149, %148 : vector<1x1xf32>
    %c1_45 = arith.constant 1 : index
    %151 = memref.load %arg3[%c1_45] : memref<5xf32, #tpu.memory_space<smem>>
    %152 = arith.mulf %134, %150 : vector<1x1xf32>
    %153 = vector.broadcast %151 : f32 to vector<1x1xf32>
    %154 = arith.subf %153, %152 : vector<1x1xf32>
    %155 = vector.broadcast %150 : vector<1x1xf32> to vector<8x169xf32>
    %156 = arith.mulf %127, %155 : vector<8x169xf32>
    %157 = vector.broadcast %154 : vector<1x1xf32> to vector<8x169xf32>
    %158 = arith.addf %156, %157 : vector<8x169xf32>
    %cst_46 = arith.constant 0.000000e+00 : f32
    %159 = vector.broadcast %cst_46 : f32 to vector<8x169xf32>
    %160 = arith.maximumf %158, %159 : vector<8x169xf32>
    %c4_i32_47 = arith.constant 4 : i32
    %161 = tpu.dynamic_rotate %160 by %c4_i32_47 dim 0 : vector<8x169xf32>, i32 -> vector<8x169xf32>
    %162 = arith.maximumf %160, %161 : vector<8x169xf32>
    %c2_i32_48 = arith.constant 2 : i32
    %163 = tpu.dynamic_rotate %162 by %c2_i32_48 dim 0 : vector<8x169xf32>, i32 -> vector<8x169xf32>
    %164 = arith.maximumf %162, %163 : vector<8x169xf32>
    %c0_49 = arith.constant 0 : index
    %c256 = arith.constant 256 : index
    %165 = vector.load %arg7[%c0_49, %c256] : memref<8x1280xf32, #tpu.memory_space<vmem>>, vector<8x169xf32>
    tpu.vector_store %arg7[%c0_49, %c256], %164 {strides = array<i32>} : memref<8x1280xf32, #tpu.memory_space<vmem>>, vector<8x169xf32>,
    %c18 = arith.constant 18 : index
    %166 = memref.load %arg1[%c18] : memref<45xf32, #tpu.memory_space<smem>>
    %167 = vector.broadcast %166 : f32 to vector<8x169xf32>
    %168 = arith.mulf %3, %167 : vector<8x169xf32>
    %c19 = arith.constant 19 : index
    %169 = memref.load %arg1[%c19] : memref<45xf32, #tpu.memory_space<smem>>
    %170 = vector.broadcast %169 : f32 to vector<8x169xf32>
    %171 = arith.mulf %5, %170 : vector<8x169xf32>
    %172 = arith.addf %168, %171 : vector<8x169xf32>
    %c20 = arith.constant 20 : index
    %173 = memref.load %arg1[%c20] : memref<45xf32, #tpu.memory_space<smem>>
    %174 = vector.broadcast %173 : f32 to vector<8x169xf32>
    %175 = arith.mulf %7, %174 : vector<8x169xf32>
    %176 = arith.addf %172, %175 : vector<8x169xf32>
    %c21 = arith.constant 21 : index
    %177 = memref.load %arg1[%c21] : memref<45xf32, #tpu.memory_space<smem>>
    %178 = vector.broadcast %177 : f32 to vector<8x169xf32>
    %179 = arith.mulf %9, %178 : vector<8x169xf32>
    %180 = arith.addf %176, %179 : vector<8x169xf32>
    %c22 = arith.constant 22 : index
    %181 = memref.load %arg1[%c22] : memref<45xf32, #tpu.memory_space<smem>>
    %182 = vector.broadcast %181 : f32 to vector<8x169xf32>
    %183 = arith.mulf %11, %182 : vector<8x169xf32>
    %184 = arith.addf %180, %183 : vector<8x169xf32>
    %c23 = arith.constant 23 : index
    %185 = memref.load %arg1[%c23] : memref<45xf32, #tpu.memory_space<smem>>
    %186 = vector.broadcast %185 : f32 to vector<8x169xf32>
    %187 = arith.mulf %13, %186 : vector<8x169xf32>
    %188 = arith.addf %184, %187 : vector<8x169xf32>
    %c24 = arith.constant 24 : index
    %189 = memref.load %arg1[%c24] : memref<45xf32, #tpu.memory_space<smem>>
    %190 = vector.broadcast %189 : f32 to vector<8x169xf32>
    %191 = arith.mulf %15, %190 : vector<8x169xf32>
    %192 = arith.addf %188, %191 : vector<8x169xf32>
    %c25 = arith.constant 25 : index
    %193 = memref.load %arg1[%c25] : memref<45xf32, #tpu.memory_space<smem>>
    %194 = vector.broadcast %193 : f32 to vector<8x169xf32>
    %195 = arith.mulf %17, %194 : vector<8x169xf32>
    %196 = arith.addf %192, %195 : vector<8x169xf32>
    %c26 = arith.constant 26 : index
    %197 = memref.load %arg1[%c26] : memref<45xf32, #tpu.memory_space<smem>>
    %198 = vector.broadcast %197 : f32 to vector<8x169xf32>
    %199 = arith.mulf %19, %198 : vector<8x169xf32>
    %200 = arith.addf %196, %199 : vector<8x169xf32>
    %201 = vector.shape_cast %200 : vector<8x169xf32> to vector<1x8x169xf32>
    %cst_50 = arith.constant dense<0.000000e+00> : vector<1xf32>
    %202 = vector.multi_reduction <add>, %201, %cst_50 [1, 2] : vector<1x8x169xf32> to vector<1xf32>
    %203 = vector.shape_cast %202 : vector<1xf32> to vector<1x1x1xf32>
    %204 = vector.extract %203[0, 0, 0] : f32 from vector<1x1x1xf32>
    %205 = vector.broadcast %204 : f32 to vector<1x1xf32>
    %cst_51 = arith.constant 7.396450e-04 : f32
    %206 = vector.broadcast %cst_51 : f32 to vector<1x1xf32>
    %207 = arith.mulf %205, %206 : vector<1x1xf32>
    %208 = vector.broadcast %207 : vector<1x1xf32> to vector<8x169xf32>
    %209 = arith.subf %200, %208 : vector<8x169xf32>
    %210 = arith.mulf %209, %209 : vector<8x169xf32>
    %211 = vector.shape_cast %210 : vector<8x169xf32> to vector<1x8x169xf32>
    %cst_52 = arith.constant dense<0.000000e+00> : vector<1xf32>
    %212 = vector.multi_reduction <add>, %211, %cst_52 [1, 2] : vector<1x8x169xf32> to vector<1xf32>
    %213 = vector.shape_cast %212 : vector<1xf32> to vector<1x1x1xf32>
    %214 = vector.extract %213[0, 0, 0] : f32 from vector<1x1x1xf32>
    %215 = vector.broadcast %214 : f32 to vector<1x1xf32>
    %cst_53 = arith.constant 7.396450e-04 : f32
    %216 = vector.broadcast %cst_53 : f32 to vector<1x1xf32>
    %217 = arith.mulf %215, %216 : vector<1x1xf32>
    %c2_54 = arith.constant 2 : index
    %218 = memref.load %arg2[%c2_54] : memref<5xf32, #tpu.memory_space<smem>>
    %cst_55 = arith.constant 9.99999974E-6 : f32
    %219 = vector.broadcast %cst_55 : f32 to vector<1x1xf32>
    %220 = arith.addf %217, %219 : vector<1x1xf32>
    %221 = math.rsqrt %220 : vector<1x1xf32>
    %222 = vector.broadcast %218 : f32 to vector<1x1xf32>
    %223 = arith.mulf %222, %221 : vector<1x1xf32>
    %c2_56 = arith.constant 2 : index
    %224 = memref.load %arg3[%c2_56] : memref<5xf32, #tpu.memory_space<smem>>
    %225 = arith.mulf %207, %223 : vector<1x1xf32>
    %226 = vector.broadcast %224 : f32 to vector<1x1xf32>
    %227 = arith.subf %226, %225 : vector<1x1xf32>
    %228 = vector.broadcast %223 : vector<1x1xf32> to vector<8x169xf32>
    %229 = arith.mulf %200, %228 : vector<8x169xf32>
    %230 = vector.broadcast %227 : vector<1x1xf32> to vector<8x169xf32>
    %231 = arith.addf %229, %230 : vector<8x169xf32>
    %cst_57 = arith.constant 0.000000e+00 : f32
    %232 = vector.broadcast %cst_57 : f32 to vector<8x169xf32>
    %233 = arith.maximumf %231, %232 : vector<8x169xf32>
    %c4_i32_58 = arith.constant 4 : i32
    %234 = tpu.dynamic_rotate %233 by %c4_i32_58 dim 0 : vector<8x169xf32>, i32 -> vector<8x169xf32>
    %235 = arith.maximumf %233, %234 : vector<8x169xf32>
    %c2_i32_59 = arith.constant 2 : i32
    %236 = tpu.dynamic_rotate %235 by %c2_i32_59 dim 0 : vector<8x169xf32>, i32 -> vector<8x169xf32>
    %237 = arith.maximumf %235, %236 : vector<8x169xf32>
    %c0_60 = arith.constant 0 : index
    %c512 = arith.constant 512 : index
    %238 = vector.load %arg7[%c0_60, %c512] : memref<8x1280xf32, #tpu.memory_space<vmem>>, vector<8x169xf32>
    tpu.vector_store %arg7[%c0_60, %c512], %237 {strides = array<i32>} : memref<8x1280xf32, #tpu.memory_space<vmem>>, vector<8x169xf32>,
    %c27 = arith.constant 27 : index
    %239 = memref.load %arg1[%c27] : memref<45xf32, #tpu.memory_space<smem>>
    %240 = vector.broadcast %239 : f32 to vector<8x169xf32>
    %241 = arith.mulf %3, %240 : vector<8x169xf32>
    %c28 = arith.constant 28 : index
    %242 = memref.load %arg1[%c28] : memref<45xf32, #tpu.memory_space<smem>>
    %243 = vector.broadcast %242 : f32 to vector<8x169xf32>
    %244 = arith.mulf %5, %243 : vector<8x169xf32>
    %245 = arith.addf %241, %244 : vector<8x169xf32>
    %c29 = arith.constant 29 : index
    %246 = memref.load %arg1[%c29] : memref<45xf32, #tpu.memory_space<smem>>
    %247 = vector.broadcast %246 : f32 to vector<8x169xf32>
    %248 = arith.mulf %7, %247 : vector<8x169xf32>
    %249 = arith.addf %245, %248 : vector<8x169xf32>
    %c30 = arith.constant 30 : index
    %250 = memref.load %arg1[%c30] : memref<45xf32, #tpu.memory_space<smem>>
    %251 = vector.broadcast %250 : f32 to vector<8x169xf32>
    %252 = arith.mulf %9, %251 : vector<8x169xf32>
    %253 = arith.addf %249, %252 : vector<8x169xf32>
    %c31 = arith.constant 31 : index
    %254 = memref.load %arg1[%c31] : memref<45xf32, #tpu.memory_space<smem>>
    %255 = vector.broadcast %254 : f32 to vector<8x169xf32>
    %256 = arith.mulf %11, %255 : vector<8x169xf32>
    %257 = arith.addf %253, %256 : vector<8x169xf32>
    %c32 = arith.constant 32 : index
    %258 = memref.load %arg1[%c32] : memref<45xf32, #tpu.memory_space<smem>>
    %259 = vector.broadcast %258 : f32 to vector<8x169xf32>
    %260 = arith.mulf %13, %259 : vector<8x169xf32>
    %261 = arith.addf %257, %260 : vector<8x169xf32>
    %c33 = arith.constant 33 : index
    %262 = memref.load %arg1[%c33] : memref<45xf32, #tpu.memory_space<smem>>
    %263 = vector.broadcast %262 : f32 to vector<8x169xf32>
    %264 = arith.mulf %15, %263 : vector<8x169xf32>
    %265 = arith.addf %261, %264 : vector<8x169xf32>
    %c34 = arith.constant 34 : index
    %266 = memref.load %arg1[%c34] : memref<45xf32, #tpu.memory_space<smem>>
    %267 = vector.broadcast %266 : f32 to vector<8x169xf32>
    %268 = arith.mulf %17, %267 : vector<8x169xf32>
    %269 = arith.addf %265, %268 : vector<8x169xf32>
    %c35 = arith.constant 35 : index
    %270 = memref.load %arg1[%c35] : memref<45xf32, #tpu.memory_space<smem>>
    %271 = vector.broadcast %270 : f32 to vector<8x169xf32>
    %272 = arith.mulf %19, %271 : vector<8x169xf32>
    %273 = arith.addf %269, %272 : vector<8x169xf32>
    %274 = vector.shape_cast %273 : vector<8x169xf32> to vector<1x8x169xf32>
    %cst_61 = arith.constant dense<0.000000e+00> : vector<1xf32>
    %275 = vector.multi_reduction <add>, %274, %cst_61 [1, 2] : vector<1x8x169xf32> to vector<1xf32>
    %276 = vector.shape_cast %275 : vector<1xf32> to vector<1x1x1xf32>
    %277 = vector.extract %276[0, 0, 0] : f32 from vector<1x1x1xf32>
    %278 = vector.broadcast %277 : f32 to vector<1x1xf32>
    %cst_62 = arith.constant 7.396450e-04 : f32
    %279 = vector.broadcast %cst_62 : f32 to vector<1x1xf32>
    %280 = arith.mulf %278, %279 : vector<1x1xf32>
    %281 = vector.broadcast %280 : vector<1x1xf32> to vector<8x169xf32>
    %282 = arith.subf %273, %281 : vector<8x169xf32>
    %283 = arith.mulf %282, %282 : vector<8x169xf32>
    %284 = vector.shape_cast %283 : vector<8x169xf32> to vector<1x8x169xf32>
    %cst_63 = arith.constant dense<0.000000e+00> : vector<1xf32>
    %285 = vector.multi_reduction <add>, %284, %cst_63 [1, 2] : vector<1x8x169xf32> to vector<1xf32>
    %286 = vector.shape_cast %285 : vector<1xf32> to vector<1x1x1xf32>
    %287 = vector.extract %286[0, 0, 0] : f32 from vector<1x1x1xf32>
    %288 = vector.broadcast %287 : f32 to vector<1x1xf32>
    %cst_64 = arith.constant 7.396450e-04 : f32
    %289 = vector.broadcast %cst_64 : f32 to vector<1x1xf32>
    %290 = arith.mulf %288, %289 : vector<1x1xf32>
    %c3_65 = arith.constant 3 : index
    %291 = memref.load %arg2[%c3_65] : memref<5xf32, #tpu.memory_space<smem>>
    %cst_66 = arith.constant 9.99999974E-6 : f32
    %292 = vector.broadcast %cst_66 : f32 to vector<1x1xf32>
    %293 = arith.addf %290, %292 : vector<1x1xf32>
    %294 = math.rsqrt %293 : vector<1x1xf32>
    %295 = vector.broadcast %291 : f32 to vector<1x1xf32>
    %296 = arith.mulf %295, %294 : vector<1x1xf32>
    %c3_67 = arith.constant 3 : index
    %297 = memref.load %arg3[%c3_67] : memref<5xf32, #tpu.memory_space<smem>>
    %298 = arith.mulf %280, %296 : vector<1x1xf32>
    %299 = vector.broadcast %297 : f32 to vector<1x1xf32>
    %300 = arith.subf %299, %298 : vector<1x1xf32>
    %301 = vector.broadcast %296 : vector<1x1xf32> to vector<8x169xf32>
    %302 = arith.mulf %273, %301 : vector<8x169xf32>
    %303 = vector.broadcast %300 : vector<1x1xf32> to vector<8x169xf32>
    %304 = arith.addf %302, %303 : vector<8x169xf32>
    %cst_68 = arith.constant 0.000000e+00 : f32
    %305 = vector.broadcast %cst_68 : f32 to vector<8x169xf32>
    %306 = arith.maximumf %304, %305 : vector<8x169xf32>
    %c4_i32_69 = arith.constant 4 : i32
    %307 = tpu.dynamic_rotate %306 by %c4_i32_69 dim 0 : vector<8x169xf32>, i32 -> vector<8x169xf32>
    %308 = arith.maximumf %306, %307 : vector<8x169xf32>
    %c2_i32_70 = arith.constant 2 : i32
    %309 = tpu.dynamic_rotate %308 by %c2_i32_70 dim 0 : vector<8x169xf32>, i32 -> vector<8x169xf32>
    %310 = arith.maximumf %308, %309 : vector<8x169xf32>
    %c0_71 = arith.constant 0 : index
    %c768 = arith.constant 768 : index
    %311 = vector.load %arg7[%c0_71, %c768] : memref<8x1280xf32, #tpu.memory_space<vmem>>, vector<8x169xf32>
    tpu.vector_store %arg7[%c0_71, %c768], %310 {strides = array<i32>} : memref<8x1280xf32, #tpu.memory_space<vmem>>, vector<8x169xf32>,
    %c36 = arith.constant 36 : index
    %312 = memref.load %arg1[%c36] : memref<45xf32, #tpu.memory_space<smem>>
    %313 = vector.broadcast %312 : f32 to vector<8x169xf32>
    %314 = arith.mulf %3, %313 : vector<8x169xf32>
    %c37 = arith.constant 37 : index
    %315 = memref.load %arg1[%c37] : memref<45xf32, #tpu.memory_space<smem>>
    %316 = vector.broadcast %315 : f32 to vector<8x169xf32>
    %317 = arith.mulf %5, %316 : vector<8x169xf32>
    %318 = arith.addf %314, %317 : vector<8x169xf32>
    %c38 = arith.constant 38 : index
    %319 = memref.load %arg1[%c38] : memref<45xf32, #tpu.memory_space<smem>>
    %320 = vector.broadcast %319 : f32 to vector<8x169xf32>
    %321 = arith.mulf %7, %320 : vector<8x169xf32>
    %322 = arith.addf %318, %321 : vector<8x169xf32>
    %c39 = arith.constant 39 : index
    %323 = memref.load %arg1[%c39] : memref<45xf32, #tpu.memory_space<smem>>
    %324 = vector.broadcast %323 : f32 to vector<8x169xf32>
    %325 = arith.mulf %9, %324 : vector<8x169xf32>
    %326 = arith.addf %322, %325 : vector<8x169xf32>
    %c40 = arith.constant 40 : index
    %327 = memref.load %arg1[%c40] : memref<45xf32, #tpu.memory_space<smem>>
    %328 = vector.broadcast %327 : f32 to vector<8x169xf32>
    %329 = arith.mulf %11, %328 : vector<8x169xf32>
    %330 = arith.addf %326, %329 : vector<8x169xf32>
    %c41 = arith.constant 41 : index
    %331 = memref.load %arg1[%c41] : memref<45xf32, #tpu.memory_space<smem>>
    %332 = vector.broadcast %331 : f32 to vector<8x169xf32>
    %333 = arith.mulf %13, %332 : vector<8x169xf32>
    %334 = arith.addf %330, %333 : vector<8x169xf32>
    %c42 = arith.constant 42 : index
    %335 = memref.load %arg1[%c42] : memref<45xf32, #tpu.memory_space<smem>>
    %336 = vector.broadcast %335 : f32 to vector<8x169xf32>
    %337 = arith.mulf %15, %336 : vector<8x169xf32>
    %338 = arith.addf %334, %337 : vector<8x169xf32>
    %c43 = arith.constant 43 : index
    %339 = memref.load %arg1[%c43] : memref<45xf32, #tpu.memory_space<smem>>
    %340 = vector.broadcast %339 : f32 to vector<8x169xf32>
    %341 = arith.mulf %17, %340 : vector<8x169xf32>
    %342 = arith.addf %338, %341 : vector<8x169xf32>
    %c44 = arith.constant 44 : index
    %343 = memref.load %arg1[%c44] : memref<45xf32, #tpu.memory_space<smem>>
    %344 = vector.broadcast %343 : f32 to vector<8x169xf32>
    %345 = arith.mulf %19, %344 : vector<8x169xf32>
    %346 = arith.addf %342, %345 : vector<8x169xf32>
    %347 = vector.shape_cast %346 : vector<8x169xf32> to vector<1x8x169xf32>
    %cst_72 = arith.constant dense<0.000000e+00> : vector<1xf32>
    %348 = vector.multi_reduction <add>, %347, %cst_72 [1, 2] : vector<1x8x169xf32> to vector<1xf32>
    %349 = vector.shape_cast %348 : vector<1xf32> to vector<1x1x1xf32>
    %350 = vector.extract %349[0, 0, 0] : f32 from vector<1x1x1xf32>
    %351 = vector.broadcast %350 : f32 to vector<1x1xf32>
    %cst_73 = arith.constant 7.396450e-04 : f32
    %352 = vector.broadcast %cst_73 : f32 to vector<1x1xf32>
    %353 = arith.mulf %351, %352 : vector<1x1xf32>
    %354 = vector.broadcast %353 : vector<1x1xf32> to vector<8x169xf32>
    %355 = arith.subf %346, %354 : vector<8x169xf32>
    %356 = arith.mulf %355, %355 : vector<8x169xf32>
    %357 = vector.shape_cast %356 : vector<8x169xf32> to vector<1x8x169xf32>
    %cst_74 = arith.constant dense<0.000000e+00> : vector<1xf32>
    %358 = vector.multi_reduction <add>, %357, %cst_74 [1, 2] : vector<1x8x169xf32> to vector<1xf32>
    %359 = vector.shape_cast %358 : vector<1xf32> to vector<1x1x1xf32>
    %360 = vector.extract %359[0, 0, 0] : f32 from vector<1x1x1xf32>
    %361 = vector.broadcast %360 : f32 to vector<1x1xf32>
    %cst_75 = arith.constant 7.396450e-04 : f32
    %362 = vector.broadcast %cst_75 : f32 to vector<1x1xf32>
    %363 = arith.mulf %361, %362 : vector<1x1xf32>
    %c4_76 = arith.constant 4 : index
    %364 = memref.load %arg2[%c4_76] : memref<5xf32, #tpu.memory_space<smem>>
    %cst_77 = arith.constant 9.99999974E-6 : f32
    %365 = vector.broadcast %cst_77 : f32 to vector<1x1xf32>
    %366 = arith.addf %363, %365 : vector<1x1xf32>
    %367 = math.rsqrt %366 : vector<1x1xf32>
    %368 = vector.broadcast %364 : f32 to vector<1x1xf32>
    %369 = arith.mulf %368, %367 : vector<1x1xf32>
    %c4_78 = arith.constant 4 : index
    %370 = memref.load %arg3[%c4_78] : memref<5xf32, #tpu.memory_space<smem>>
    %371 = arith.mulf %353, %369 : vector<1x1xf32>
    %372 = vector.broadcast %370 : f32 to vector<1x1xf32>
    %373 = arith.subf %372, %371 : vector<1x1xf32>
    %374 = vector.broadcast %369 : vector<1x1xf32> to vector<8x169xf32>
    %375 = arith.mulf %346, %374 : vector<8x169xf32>
    %376 = vector.broadcast %373 : vector<1x1xf32> to vector<8x169xf32>
    %377 = arith.addf %375, %376 : vector<8x169xf32>
    %cst_79 = arith.constant 0.000000e+00 : f32
    %378 = vector.broadcast %cst_79 : f32 to vector<8x169xf32>
    %379 = arith.maximumf %377, %378 : vector<8x169xf32>
    %c4_i32_80 = arith.constant 4 : i32
    %380 = tpu.dynamic_rotate %379 by %c4_i32_80 dim 0 : vector<8x169xf32>, i32 -> vector<8x169xf32>
    %381 = arith.maximumf %379, %380 : vector<8x169xf32>
    %c2_i32_81 = arith.constant 2 : i32
    %382 = tpu.dynamic_rotate %381 by %c2_i32_81 dim 0 : vector<8x169xf32>, i32 -> vector<8x169xf32>
    %383 = arith.maximumf %381, %382 : vector<8x169xf32>
    %c0_82 = arith.constant 0 : index
    %c1024 = arith.constant 1024 : index
    %384 = vector.load %arg7[%c0_82, %c1024] : memref<8x1280xf32, #tpu.memory_space<vmem>>, vector<8x169xf32>
    tpu.vector_store %arg7[%c0_82, %c1024], %383 {strides = array<i32>} : memref<8x1280xf32, #tpu.memory_space<vmem>>, vector<8x169xf32>,
    %c0_83 = arith.constant 0 : index
    %c0_84 = arith.constant 0 : index
    %385 = vector.load %arg7[%c0_83, %c0_84] : memref<8x1280xf32, #tpu.memory_space<vmem>>, vector<8x1280xf32>
    %c0_85 = arith.constant 0 : index
    %c0_86 = arith.constant 0 : index
    %386 = vector.load %arg4[%c0_85, %c0_86] : memref<1280x10xf32, #tpu.memory_space<vmem>>, vector<1280x10xf32>
    %cst_87 = arith.constant dense<0.000000e+00> : vector<8x10xf32>
    %387 = tpu.matmul %385, %386, %cst_87 {dimension_numbers = #tpu.dot_dimension_numbers<[1], [0], [0], [1], [0, 0, 1, 1], [], []>} : vector<8x1280xf32>, vector<1280x10xf32>, vector<8x10xf32> -> vector<8x10xf32>
    %388 = vector.extract_strided_slice %387 {offsets = [0, 0], sizes = [2, 10], strides = [1, 1]} : vector<8x10xf32> to vector<2x10xf32>
    %c0_88 = arith.constant 0 : index
    %c0_89 = arith.constant 0 : index
    %389 = vector.load %arg5[%c0_88, %c0_89] : memref<1x10xf32, #tpu.memory_space<vmem>>, vector<1x10xf32>
    %390 = vector.broadcast %389 : vector<1x10xf32> to vector<2x10xf32>
    %391 = arith.addf %388, %390 : vector<2x10xf32>
    %c0_90 = arith.constant 0 : index
    %c0_91 = arith.constant 0 : index
    %392 = vector.load %arg6[%c0_90, %c0_91] : memref<2x10xf32, #tpu.memory_space<vmem>>, vector<2x10xf32>
    tpu.vector_store %arg6[%c0_90, %c0_91], %391 {strides = array<i32>} : memref<2x10xf32, #tpu.memory_space<vmem>>, vector<2x10xf32>,
    return
  }
}

</mosaic_0001>

<llo_original>
// kernel: netbn_forward.1
$region0: #{netbn_forward.1}
  #allocation0 [shape = 'u32[]', space=smem, size = 0x4, offset = 0x4, fixed_abs, tag = 'smem constant byte address 0x4 - core index']
  #allocation1 [shape = 'u32[144,128]{1,0:T(1,128)}', space=vmem, size = 0x12000, scoped, tag = 'internal scratch']
  #allocation2 [shape = 'f32[8,1280]{1,0:T(8,128)}', space=vmem, size = 0xa000, scoped, tag = 'scratch operand']
  %s0 = inlined_call_operand.vmem [shape: f32[9,8,169], index: 0, kind: input, shape index: {}]
  %s1 = inlined_call_operand.vmem [shape: f32[45], index: 1, kind: input, shape index: {}]
  %s2 = inlined_call_operand.vmem [shape: f32[5], index: 2, kind: input, shape index: {}]
  %s3 = inlined_call_operand.vmem [shape: f32[5], index: 3, kind: input, shape index: {}]
  %s4 = inlined_call_operand.vmem [shape: f32[1280,10], index: 4, kind: input, shape index: {}]
  %s5 = inlined_call_operand.vmem [shape: f32[1,10], index: 5, kind: input, shape index: {}]
  %s6 = inlined_call_operand.hbm [shape: f32[2,10], index: 6, kind: output, shape index: {}]
  %s7 = sld [smem:[#allocation0]]
  $region46: #{netbn_forward.1} parent=0
    _
  %s9 = ssub.s32 1, %s7
  %s10 = scalar_select 0, %s9, %s7
  $region1: #{netbn_forward.1} parent=0
    #allocation3 [shape = 'u8[512]{0}', space=smem, size = 0x200, scoped, tag = 'input window, operand 1, single buffered']
    #allocation4 [shape = 's32[1]{0}', space=sflag, size = 0x4, scoped, tag = 'scoped memory for netbn_forward.1']
    #allocation5 [shape = 's32[1]{0}', space=sflag, size = 0x4, scoped, tag = 'scoped memory for netbn_forward.1']
    #allocation6 [shape = 'u8[512]{0}', space=smem, size = 0x200, scoped, tag = 'input window, operand 2, single buffered']
    #allocation7 [shape = 's32[1]{0}', space=sflag, size = 0x4, scoped, tag = 'scoped memory for netbn_forward.1']
    #allocation8 [shape = 'u8[512]{0}', space=smem, size = 0x200, scoped, tag = 'input window, operand 3, single buffered']
    #allocation9 [shape = 'u8[1024]{0}', space=vmem, size = 0x400, scoped, tag = 'output window, operand 0, single buffered']
    %11 = vsyncpa [#allocation5], 0
    %12 = vsyncpa [#allocation7], 0
    %13 = vsyncpa [#allocation4], 0
    // Predicated region
    $region2: #{netbn_forward.1} parent=1 // pred_check
      _
    $region3: #{netbn_forward.1} parent=1 // pred_check_branch
      %15 = sbr.rel (0) target = $region5
    $region4: #{netbn_forward.1} parent=1 // pred_region
      _
    $region5: #{netbn_forward.1} parent=1 // pred_fallthru
      _
    // Predicated region
    $region6: #{netbn_forward.1} parent=1 // pred_check
      _
    $region7: #{netbn_forward.1} parent=1 // pred_check_branch
      %17 = sbr.rel (0) target = $region9
    $region8: #{netbn_forward.1} parent=1 // pred_region
      %s19 = ssub.s32 16, 16
      %20 = vsyncadd [#allocation5], %s19
      %s22 = sshll.u32 %s1, 4
      %s23 = int_to_ptr.vmem [resolvable:$true] %s22
      %25 = dma.vmem_to_smem %s23, 16, [#allocation3], [#allocation5]
    $region9: #{netbn_forward.1} parent=1 // pred_fallthru
      _
    // Predicated region
    $region10: #{netbn_forward.1} parent=1 // pred_check
      _
    $region11: #{netbn_forward.1} parent=1 // pred_check_branch
      %27 = sbr.rel (0) target = $region13
    $region12: #{netbn_forward.1} parent=1 // pred_region
      %s29 = ssub.s32 16, 16
      %30 = vsyncadd [#allocation7], %s29
      %s32 = sshll.u32 %s2, 4
      %s33 = int_to_ptr.vmem [resolvable:$true] %s32
      %35 = dma.vmem_to_smem %s33, 16, [#allocation6], [#allocation7]
    $region13: #{netbn_forward.1} parent=1 // pred_fallthru
      _
    // Predicated region
    $region14: #{netbn_forward.1} parent=1 // pred_check
      _
    $region15: #{netbn_forward.1} parent=1 // pred_check_branch
      %37 = sbr.rel (0) target = $region17
    $region16: #{netbn_forward.1} parent=1 // pred_region
      %s39 = ssub.s32 16, 16
      %40 = vsyncadd [#allocation7], %s39
      %s42 = sshll.u32 %s3, 4
      %s43 = int_to_ptr.vmem [resolvable:$true] %s42
      %45 = dma.vmem_to_smem %s43, 16, [#allocation8], [#allocation7]
    $region17: #{netbn_forward.1} parent=1 // pred_fallthru
      _
    // Predicated region
    $region18: #{netbn_forward.1} parent=1 // pred_check
      _
    $region19: #{netbn_forward.1} parent=1 // pred_check_branch
      %47 = sbr.rel (0) target = $region21
    $region20: #{netbn_forward.1} parent=1 // pred_region
      _
    $region21: #{netbn_forward.1} parent=1 // pred_fallthru
      _
    // Predicated region
    $region22: #{netbn_forward.1} parent=1 // pred_check
      _
    $region23: #{netbn_forward.1} parent=1 // pred_check_branch
      %49 = sbr.rel (0) target = $region25
    $region24: #{netbn_forward.1} parent=1 // pred_region
      _
    $region25: #{netbn_forward.1} parent=1 // pred_fallthru
      _
    // Predicated region
    $region26: #{netbn_forward.1} parent=1 // pred_check
      _
    $region27: #{netbn_forward.1} parent=1 // pred_check_branch
      %51 = sbr.rel (0) target = $region29
    $region28: #{netbn_forward.1} parent=1 // pred_region
      %52 = dma.done [#allocation5], 16
    $region29: #{netbn_forward.1} parent=1 // pred_fallthru
      _
    // Predicated region
    $region30: #{netbn_forward.1} parent=1 // pred_check
      _
    $region31: #{netbn_forward.1} parent=1 // pred_check_branch
      %54 = sbr.rel (0) target = $region33
    $region32: #{netbn_forward.1} parent=1 // pred_region
      %55 = dma.done [#allocation7], 16
    $region33: #{netbn_forward.1} parent=1 // pred_fallthru
      _
    // Predicated region
    $region34: #{netbn_forward.1} parent=1 // pred_check
      _
    $region35: #{netbn_forward.1} parent=1 // pred_check_branch
      %57 = sbr.rel (0) target = $region37
    $region36: #{netbn_forward.1} parent=1 // pred_region
      %58 = dma.done [#allocation7], 16
    $region37: #{netbn_forward.1} parent=1 // pred_fallthru
      _
    %59 = sfence
    %60 = vst [vmem:[#allocation2] sm:$0xff] 0.0
    %61 = vst [vmem:[#allocation2 + $0x8] sm:$0xff] 0.0
    %62 = vst [vmem:[#allocation2 + $0x10] sm:$0xff] 0.0
    %63 = vst [vmem:[#allocation2 + $0x18] sm:$0xff] 0.0
    %64 = vst [vmem:[#allocation2 + $0x20] sm:$0xff] 0.0
    %65 = vst [vmem:[#allocation2 + $0x28] sm:$0xff] 0.0
    %66 = vst [vmem:[#allocation2 + $0x30] sm:$0xff] 0.0
    %67 = vst [vmem:[#allocation2 + $0x38] sm:$0xff] 0.0
    %68 = vst [vmem:[#allocation2 + $0x40] sm:$0xff] 0.0
    %69 = vst [vmem:[#allocation2 + $0x48] sm:$0xff] 0.0
    %v70 = vld [vmem:[%s0] sm:$0xff]
    %v71 = vld [vmem:[%s0 + $0x8] sm:$0xff]
    %s72 = scalar_lea.vmem %s0, 16
    %v73 = vld [vmem:[%s72] sm:$0xff]
    %v74 = vld [vmem:[%s72 + $0x8] sm:$0xff]
    %s75 = scalar_lea.vmem %s0, 32
    %v76 = vld [vmem:[%s75] sm:$0xff]
    %v77 = vld [vmem:[%s75 + $0x8] sm:$0xff]
    %s78 = scalar_lea.vmem %s0, 48
    %v79 = vld [vmem:[%s78] sm:$0xff]
    %v80 = vld [vmem:[%s78 + $0x8] sm:$0xff]
    %s81 = scalar_lea.vmem %s0, 64
    %v82 = vld [vmem:[%s81] sm:$0xff]
    %v83 = vld [vmem:[%s81 + $0x8] sm:$0xff]
    %s84 = scalar_lea.vmem %s0, 80
    %v85 = vld [vmem:[%s84] sm:$0xff]
    %v86 = vld [vmem:[%s84 + $0x8] sm:$0xff]
    %s87 = scalar_lea.vmem %s0, 96
    %v88 = vld [vmem:[%s87] sm:$0xff]
    %v89 = vld [vmem:[%s87 + $0x8] sm:$0xff]
    %s90 = scalar_lea.vmem %s0, 112
    %v91 = vld [vmem:[%s90] sm:$0xff]
    %v92 = vld [vmem:[%s90 + $0x8] sm:$0xff]
    %s93 = scalar_lea.vmem %s0, 128
    %v94 = vld [vmem:[%s93] sm:$0xff]
    %v95 = vld [vmem:[%s93 + $0x8] sm:$0xff]
    %s96 = sld [smem:[#allocation3]]
    %v97 = vstv %s96
    %v98 = vmul.f32 %v70, %v97
    %v99 = vmul.f32 %v71, %v97
    %s100 = sld [smem:[#allocation3 + $0x1]]
    %v101 = vstv %s100
    %v102 = vmul.f32 %v73, %v101
    %v103 = vmul.f32 %v74, %v101
    %v104 = vadd.f32 %v98, %v102
    %v105 = vadd.f32 %v99, %v103
    %s106 = sld [smem:[#allocation3 + $0x2]]
    %v107 = vstv %s106
    %v108 = vmul.f32 %v76, %v107
    %v109 = vmul.f32 %v77, %v107
    %v110 = vadd.f32 %v104, %v108
    %v111 = vadd.f32 %v105, %v109
    %s112 = sld [smem:[#allocation3 + $0x3]]
    %v113 = vstv %s112
    %v114 = vmul.f32 %v79, %v113
    %v115 = vmul.f32 %v80, %v113
    %v116 = vadd.f32 %v110, %v114
    %v117 = vadd.f32 %v111, %v115
    %s118 = sld [smem:[#allocation3 + $0x4]]
    %v119 = vstv %s118
    %v120 = vmul.f32 %v82, %v119
    %v121 = vmul.f32 %v83, %v119
    %v122 = vadd.f32 %v116, %v120
    %v123 = vadd.f32 %v117, %v121
    %s124 = sld [smem:[#allocation3 + $0x5]]
    %v125 = vstv %s124
    %v126 = vmul.f32 %v85, %v125
    %v127 = vmul.f32 %v86, %v125
    %v128 = vadd.f32 %v122, %v126
    %v129 = vadd.f32 %v123, %v127
    %s130 = sld [smem:[#allocation3 + $0x6]]
    %v131 = vstv %s130
    %v132 = vmul.f32 %v88, %v131
    %v133 = vmul.f32 %v89, %v131
    %v134 = vadd.f32 %v128, %v132
    %v135 = vadd.f32 %v129, %v133
    %s136 = sld [smem:[#allocation3 + $0x7]]
    %v137 = vstv %s136
    %v138 = vmul.f32 %v91, %v137
    %v139 = vmul.f32 %v92, %v137
    %v140 = vadd.f32 %v134, %v138
    %v141 = vadd.f32 %v135, %v139
    %s142 = sld [smem:[#allocation3 + $0x8]]
    %v143 = vstv %s142
    %v144 = vmul.f32 %v94, %v143
    %v145 = vmul.f32 %v95, %v143
    %v146 = vadd.f32 %v140, %v144
    %v147 = vadd.f32 %v141, %v145
    %vm148 = vcmask 334848
    %v149 = vsel %vm148, %v147, 0.0
    %v150 = vadd.f32 %v146, %v149
    %151 = vadd.xlane.f32.xlu0 %v150
    %v152 = vpop.xlane.xlu0 %151
    %v153 = vrot.slane %v152, 4
    %v154 = vadd.f32 %v152, %v153
    %v155 = vrot.slane %v154, 2
    %v156 = vadd.f32 %v154, %v155
    %v157 = vrot.slane %v156, 1
    %v158 = vadd.f32 %v156, %v157
    %s159 = vtos %v158
    %v160 = vstv %s159
    %v161 = vmul.f32 %v160, 0.000739645
    %v162 = vsub.f32 %v146, %v161
    %v163 = vsub.f32 %v147, %v161
    %v164 = vmul.f32 %v162, %v162
    %v165 = vmul.f32 %v163, %v163
    %v166 = vsel %vm148, %v165, 0.0
    %v167 = vadd.f32 %v164, %v166
    %168 = vadd.xlane.f32.xlu0 %v167
    %v169 = vpop.xlane.xlu0 %168
    %v170 = vrot.slane %v169, 4
    %v171 = vadd.f32 %v169, %v170
    %v172 = vrot.slane %v171, 2
    %v173 = vadd.f32 %v171, %v172
    %v174 = vrot.slane %v173, 1
    %v175 = vadd.f32 %v173, %v174
    %s176 = vtos %v175
    %v177 = vstv %s176
    %v178 = vmul.f32 %v177, 0.000739645
    %s179 = sld [smem:[#allocation6]]
    %v180 = vadd.f32 %v178, 1e-05
    %v181 = vrsqrt.pop %v180
    %v182 = vstv %s179
    %v183 = vmul.f32 %v182, %v181
    %s184 = sld [smem:[#allocation8]]
    %v185 = vmul.f32 %v161, %v183
    %v186 = vstv %s184
    %v187 = vsub.f32 %v186, %v185
    %v188 = vmul.f32 %v146, %v183
    %v189 = vmul.f32 %v147, %v183
    %v190 = vadd.f32 %v188, %v187
    %v191 = vadd.f32 %v189, %v187
    %v192 = vmax.f32 %v190, 0.0
    %v193 = vmax.f32 %v191, 0.0
    %v194 = vrot.slane %v192, 4
    %v195 = vrot.slane %v193, 4
    %v196 = vmax.f32 %v192, %v194
    %v197 = vmax.f32 %v193, %v195
    %v198 = vrot.slane %v196, 6
    %v199 = vrot.slane %v197, 6
    %v200 = vmax.f32 %v196, %v198
    %v201 = vmax.f32 %v197, %v199
    %202 = vst [vmem:[#allocation2] sm:$0xff] %v200
    %203 = vst.msk [vmem:[#allocation2 + $0x8] sm:$0xff] %vm148, %v201
    %s204 = sld [smem:[#allocation3 + $0x9]]
    %v205 = vstv %s204
    %v206 = vmul.f32 %v70, %v205
    %v207 = vmul.f32 %v71, %v205
    %s208 = sld [smem:[#allocation3 + $0xa]]
    %v209 = vstv %s208
    %v210 = vmul.f32 %v73, %v209
    %v211 = vmul.f32 %v74, %v209
    %v212 = vadd.f32 %v206, %v210
    %v213 = vadd.f32 %v207, %v211
    %s214 = sld [smem:[#allocation3 + $0xb]]
    %v215 = vstv %s214
    %v216 = vmul.f32 %v76, %v215
    %v217 = vmul.f32 %v77, %v215
    %v218 = vadd.f32 %v212, %v216
    %v219 = vadd.f32 %v213, %v217
    %s220 = sld [smem:[#allocation3 + $0xc]]
    %v221 = vstv %s220
    %v222 = vmul.f32 %v79, %v221
    %v223 = vmul.f32 %v80, %v221
    %v224 = vadd.f32 %v218, %v222
    %v225 = vadd.f32 %v219, %v223
    %s226 = sld [smem:[#allocation3 + $0xd]]
    %v227 = vstv %s226
    %v228 = vmul.f32 %v82, %v227
    %v229 = vmul.f32 %v83, %v227
    %v230 = vadd.f32 %v224, %v228
    %v231 = vadd.f32 %v225, %v229
    %s232 = sld [smem:[#allocation3 + $0xe]]
    %v233 = vstv %s232
    %v234 = vmul.f32 %v85, %v233
    %v235 = vmul.f32 %v86, %v233
    %v236 = vadd.f32 %v230, %v234
    %v237 = vadd.f32 %v231, %v235
    %s238 = sld [smem:[#allocation3 + $0xf]]
    %v239 = vstv %s238
    %v240 = vmul.f32 %v88, %v239
    %v241 = vmul.f32 %v89, %v239
    %v242 = vadd.f32 %v236, %v240
    %v243 = vadd.f32 %v237, %v241
    %s244 = sld [smem:[#allocation3 + $0x10]]
    %v245 = vstv %s244
    %v246 = vmul.f32 %v91, %v245
    %v247 = vmul.f32 %v92, %v245
    %v248 = vadd.f32 %v242, %v246
    %v249 = vadd.f32 %v243, %v247
    %s250 = sld [smem:[#allocation3 + $0x11]]
    %v251 = vstv %s250
    %v252 = vmul.f32 %v94, %v251
    %v253 = vmul.f32 %v95, %v251
    %v254 = vadd.f32 %v248, %v252
    %v255 = vadd.f32 %v249, %v253
    %v256 = vsel %vm148, %v255, 0.0
    %v257 = vadd.f32 %v254, %v256
    %258 = vadd.xlane.f32.xlu0 %v257
    %v259 = vpop.xlane.xlu0 %258
    %v260 = vrot.slane %v259, 4
    %v261 = vadd.f32 %v259, %v260
    %v262 = vrot.slane %v261, 2
    %v263 = vadd.f32 %v261, %v262
    %v264 = vrot.slane %v263, 1
    %v265 = vadd.f32 %v263, %v264
    %s266 = vtos %v265
    %v267 = vstv %s266
    %v268 = vmul.f32 %v267, 0.000739645
    %v269 = vsub.f32 %v254, %v268
    %v270 = vsub.f32 %v255, %v268
    %v271 = vmul.f32 %v269, %v269
    %v272 = vmul.f32 %v270, %v270
    %v273 = vsel %vm148, %v272, 0.0
    %v274 = vadd.f32 %v271, %v273
    %275 = vadd.xlane.f32.xlu0 %v274
    %v276 = vpop.xlane.xlu0 %275
    %v277 = vrot.slane %v276, 4
    %v278 = vadd.f32 %v276, %v277
    %v279 = vrot.slane %v278, 2
    %v280 = vadd.f32 %v278, %v279
    %v281 = vrot.slane %v280, 1
    %v282 = vadd.f32 %v280, %v281
    %s283 = vtos %v282
    %v284 = vstv %s283
    %v285 = vmul.f32 %v284, 0.000739645
    %s286 = sld [smem:[#allocation6 + $0x1]]
    %v287 = vadd.f32 %v285, 1e-05
    %v288 = vrsqrt.pop %v287
    %v289 = vstv %s286
    %v290 = vmul.f32 %v289, %v288
    %s291 = sld [smem:[#allocation8 + $0x1]]
    %v292 = vmul.f32 %v268, %v290
    %v293 = vstv %s291
    %v294 = vsub.f32 %v293, %v292
    %v295 = vmul.f32 %v254, %v290
    %v296 = vmul.f32 %v255, %v290
    %v297 = vadd.f32 %v295, %v294
    %v298 = vadd.f32 %v296, %v294
    %v299 = vmax.f32 %v297, 0.0
    %v300 = vmax.f32 %v298, 0.0
    %v301 = vrot.slane %v299, 4
    %v302 = vrot.slane %v300, 4
    %v303 = vmax.f32 %v299, %v301
    %v304 = vmax.f32 %v300, %v302
    %v305 = vrot.slane %v303, 6
    %v306 = vrot.slane %v304, 6
    %v307 = vmax.f32 %v303, %v305
    %v308 = vmax.f32 %v304, %v306
    %309 = vst [vmem:[#allocation2 + $0x10] sm:$0xff] %v307
    %310 = vst.msk [vmem:[#allocation2 + $0x18] sm:$0xff] %vm148, %v308
    %s311 = sld [smem:[#allocation3 + $0x12]]
    %v312 = vstv %s311
    %v313 = vmul.f32 %v70, %v312
    %v314 = vmul.f32 %v71, %v312
    %s315 = sld [smem:[#allocation3 + $0x13]]
    %v316 = vstv %s315
    %v317 = vmul.f32 %v73, %v316
    %v318 = vmul.f32 %v74, %v316
    %v319 = vadd.f32 %v313, %v317
    %v320 = vadd.f32 %v314, %v318
    %s321 = sld [smem:[#allocation3 + $0x14]]
    %v322 = vstv %s321
    %v323 = vmul.f32 %v76, %v322
    %v324 = vmul.f32 %v77, %v322
    %v325 = vadd.f32 %v319, %v323
    %v326 = vadd.f32 %v320, %v324
    %s327 = sld [smem:[#allocation3 + $0x15]]
    %v328 = vstv %s327
    %v329 = vmul.f32 %v79, %v328
    %v330 = vmul.f32 %v80, %v328
    %v331 = vadd.f32 %v325, %v329
    %v332 = vadd.f32 %v326, %v330
    %s333 = sld [smem:[#allocation3 + $0x16]]
    %v334 = vstv %s333
    %v335 = vmul.f32 %v82, %v334
    %v336 = vmul.f32 %v83, %v334
    %v337 = vadd.f32 %v331, %v335
    %v338 = vadd.f32 %v332, %v336
    %s339 = sld [smem:[#allocation3 + $0x17]]
    %v340 = vstv %s339
    %v341 = vmul.f32 %v85, %v340
    %v342 = vmul.f32 %v86, %v340
    %v343 = vadd.f32 %v337, %v341
    %v344 = vadd.f32 %v338, %v342
    %s345 = sld [smem:[#allocation3 + $0x18]]
    %v346 = vstv %s345
    %v347 = vmul.f32 %v88, %v346
    %v348 = vmul.f32 %v89, %v346
    %v349 = vadd.f32 %v343, %v347
    %v350 = vadd.f32 %v344, %v348
    %s351 = sld [smem:[#allocation3 + $0x19]]
    %v352 = vstv %s351
    %v353 = vmul.f32 %v91, %v352
    %v354 = vmul.f32 %v92, %v352
    %v355 = vadd.f32 %v349, %v353
    %v356 = vadd.f32 %v350, %v354
    %s357 = sld [smem:[#allocation3 + $0x1a]]
    %v358 = vstv %s357
    %v359 = vmul.f32 %v94, %v358
    %v360 = vmul.f32 %v95, %v358
    %v361 = vadd.f32 %v355, %v359
    %v362 = vadd.f32 %v356, %v360
    %v363 = vsel %vm148, %v362, 0.0
    %v364 = vadd.f32 %v361, %v363
    %365 = vadd.xlane.f32.xlu0 %v364
    %v366 = vpop.xlane.xlu0 %365
    %v367 = vrot.slane %v366, 4
    %v368 = vadd.f32 %v366, %v367
    %v369 = vrot.slane %v368, 2
    %v370 = vadd.f32 %v368, %v369
    %v371 = vrot.slane %v370, 1
    %v372 = vadd.f32 %v370, %v371
    %s373 = vtos %v372
    %v374 = vstv %s373
    %v375 = vmul.f32 %v374, 0.000739645
    %v376 = vsub.f32 %v361, %v375
    %v377 = vsub.f32 %v362, %v375
    %v378 = vmul.f32 %v376, %v376
    %v379 = vmul.f32 %v377, %v377
    %v380 = vsel %vm148, %v379, 0.0
    %v381 = vadd.f32 %v378, %v380
    %382 = vadd.xlane.f32.xlu0 %v381
    %v383 = vpop.xlane.xlu0 %382
    %v384 = vrot.slane %v383, 4
    %v385 = vadd.f32 %v383, %v384
    %v386 = vrot.slane %v385, 2
    %v387 = vadd.f32 %v385, %v386
    %v388 = vrot.slane %v387, 1
    %v389 = vadd.f32 %v387, %v388
    %s390 = vtos %v389
    %v391 = vstv %s390
    %v392 = vmul.f32 %v391, 0.000739645
    %s393 = sld [smem:[#allocation6 + $0x2]]
    %v394 = vadd.f32 %v392, 1e-05
    %v395 = vrsqrt.pop %v394
    %v396 = vstv %s393
    %v397 = vmul.f32 %v396, %v395
    %s398 = sld [smem:[#allocation8 + $0x2]]
    %v399 = vmul.f32 %v375, %v397
    %v400 = vstv %s398
    %v401 = vsub.f32 %v400, %v399
    %v402 = vmul.f32 %v361, %v397
    %v403 = vmul.f32 %v362, %v397
    %v404 = vadd.f32 %v402, %v401
    %v405 = vadd.f32 %v403, %v401
    %v406 = vmax.f32 %v404, 0.0
    %v407 = vmax.f32 %v405, 0.0
    %v408 = vrot.slane %v406, 4
    %v409 = vrot.slane %v407, 4
    %v410 = vmax.f32 %v406, %v408
    %v411 = vmax.f32 %v407, %v409
    %v412 = vrot.slane %v410, 6
    %v413 = vrot.slane %v411, 6
    %v414 = vmax.f32 %v410, %v412
    %v415 = vmax.f32 %v411, %v413
    %416 = vst [vmem:[#allocation2 + $0x20] sm:$0xff] %v414
    %417 = vst.msk [vmem:[#allocation2 + $0x28] sm:$0xff] %vm148, %v415
    %s418 = sld [smem:[#allocation3 + $0x1b]]
    %v419 = vstv %s418
    %v420 = vmul.f32 %v70, %v419
    %v421 = vmul.f32 %v71, %v419
    %s422 = sld [smem:[#allocation3 + $0x1c]]
    %v423 = vstv %s422
    %v424 = vmul.f32 %v73, %v423
    %v425 = vmul.f32 %v74, %v423
    %v426 = vadd.f32 %v420, %v424
    %v427 = vadd.f32 %v421, %v425
    %s428 = sld [smem:[#allocation3 + $0x1d]]
    %v429 = vstv %s428
    %v430 = vmul.f32 %v76, %v429
    %v431 = vmul.f32 %v77, %v429
    %v432 = vadd.f32 %v426, %v430
    %v433 = vadd.f32 %v427, %v431
    %s434 = sld [smem:[#allocation3 + $0x1e]]
    %v435 = vstv %s434
    %v436 = vmul.f32 %v79, %v435
    %v437 = vmul.f32 %v80, %v435
    %v438 = vadd.f32 %v432, %v436
    %v439 = vadd.f32 %v433, %v437
    %s440 = sld [smem:[#allocation3 + $0x1f]]
    %v441 = vstv %s440
    %v442 = vmul.f32 %v82, %v441
    %v443 = vmul.f32 %v83, %v441
    %v444 = vadd.f32 %v438, %v442
    %v445 = vadd.f32 %v439, %v443
    %s446 = sld [smem:[#allocation3 + $0x20]]
    %v447 = vstv %s446
    %v448 = vmul.f32 %v85, %v447
    %v449 = vmul.f32 %v86, %v447
    %v450 = vadd.f32 %v444, %v448
    %v451 = vadd.f32 %v445, %v449
    %s452 = sld [smem:[#allocation3 + $0x21]]
    %v453 = vstv %s452
    %v454 = vmul.f32 %v88, %v453
    %v455 = vmul.f32 %v89, %v453
    %v456 = vadd.f32 %v450, %v454
    %v457 = vadd.f32 %v451, %v455
    %s458 = sld [smem:[#allocation3 + $0x22]]
    %v459 = vstv %s458
    %v460 = vmul.f32 %v91, %v459
    %v461 = vmul.f32 %v92, %v459
    %v462 = vadd.f32 %v456, %v460
    %v463 = vadd.f32 %v457, %v461
    %s464 = sld [smem:[#allocation3 + $0x23]]
    %v465 = vstv %s464
    %v466 = vmul.f32 %v94, %v465
    %v467 = vmul.f32 %v95, %v465
    %v468 = vadd.f32 %v462, %v466
    %v469 = vadd.f32 %v463, %v467
    %v470 = vsel %vm148, %v469, 0.0
    %v471 = vadd.f32 %v468, %v470
    %472 = vadd.xlane.f32.xlu0 %v471
    %v473 = vpop.xlane.xlu0 %472
    %v474 = vrot.slane %v473, 4
    %v475 = vadd.f32 %v473, %v474
    %v476 = vrot.slane %v475, 2
    %v477 = vadd.f32 %v475, %v476
    %v478 = vrot.slane %v477, 1
    %v479 = vadd.f32 %v477, %v478
    %s480 = vtos %v479
    %v481 = vstv %s480
    %v482 = vmul.f32 %v481, 0.000739645
    %v483 = vsub.f32 %v468, %v482
    %v484 = vsub.f32 %v469, %v482
    %v485 = vmul.f32 %v483, %v483
    %v486 = vmul.f32 %v484, %v484
    %v487 = vsel %vm148, %v486, 0.0
    %v488 = vadd.f32 %v485, %v487
    %489 = vadd.xlane.f32.xlu0 %v488
    %v490 = vpop.xlane.xlu0 %489
    %v491 = vrot.slane %v490, 4
    %v492 = vadd.f32 %v490, %v491
    %v493 = vrot.slane %v492, 2
    %v494 = vadd.f32 %v492, %v493
    %v495 = vrot.slane %v494, 1
    %v496 = vadd.f32 %v494, %v495
    %s497 = vtos %v496
    %v498 = vstv %s497
    %v499 = vmul.f32 %v498, 0.000739645
    %s500 = sld [smem:[#allocation6 + $0x3]]
    %v501 = vadd.f32 %v499, 1e-05
    %v502 = vrsqrt.pop %v501
    %v503 = vstv %s500
    %v504 = vmul.f32 %v503, %v502
    %s505 = sld [smem:[#allocation8 + $0x3]]
    %v506 = vmul.f32 %v482, %v504
    %v507 = vstv %s505
    %v508 = vsub.f32 %v507, %v506
    %v509 = vmul.f32 %v468, %v504
    %v510 = vmul.f32 %v469, %v504
    %v511 = vadd.f32 %v509, %v508
    %v512 = vadd.f32 %v510, %v508
    %v513 = vmax.f32 %v511, 0.0
    %v514 = vmax.f32 %v512, 0.0
    %v515 = vrot.slane %v513, 4
    %v516 = vrot.slane %v514, 4
    %v517 = vmax.f32 %v513, %v515
    %v518 = vmax.f32 %v514, %v516
    %v519 = vrot.slane %v517, 6
    %v520 = vrot.slane %v518, 6
    %v521 = vmax.f32 %v517, %v519
    %v522 = vmax.f32 %v518, %v520
    %523 = vst [vmem:[#allocation2 + $0x30] sm:$0xff] %v521
    %524 = vst.msk [vmem:[#allocation2 + $0x38] sm:$0xff] %vm148, %v522
    %s525 = sld [smem:[#allocation3 + $0x24]]
    %v526 = vstv %s525
    %v527 = vmul.f32 %v70, %v526
    %v528 = vmul.f32 %v71, %v526
    %s529 = sld [smem:[#allocation3 + $0x25]]
    %v530 = vstv %s529
    %v531 = vmul.f32 %v73, %v530
    %v532 = vmul.f32 %v74, %v530
    %v533 = vadd.f32 %v527, %v531
    %v534 = vadd.f32 %v528, %v532
    %s535 = sld [smem:[#allocation3 + $0x26]]
    %v536 = vstv %s535
    %v537 = vmul.f32 %v76, %v536
    %v538 = vmul.f32 %v77, %v536
    %v539 = vadd.f32 %v533, %v537
    %v540 = vadd.f32 %v534, %v538
    %s541 = sld [smem:[#allocation3 + $0x27]]
    %v542 = vstv %s541
    %v543 = vmul.f32 %v79, %v542
    %v544 = vmul.f32 %v80, %v542
    %v545 = vadd.f32 %v539, %v543
    %v546 = vadd.f32 %v540, %v544
    %s547 = sld [smem:[#allocation3 + $0x28]]
    %v548 = vstv %s547
    %v549 = vmul.f32 %v82, %v548
    %v550 = vmul.f32 %v83, %v548
    %v551 = vadd.f32 %v545, %v549
    %v552 = vadd.f32 %v546, %v550
    %s553 = sld [smem:[#allocation3 + $0x29]]
    %v554 = vstv %s553
    %v555 = vmul.f32 %v85, %v554
    %v556 = vmul.f32 %v86, %v554
    %v557 = vadd.f32 %v551, %v555
    %v558 = vadd.f32 %v552, %v556
    %s559 = sld [smem:[#allocation3 + $0x2a]]
    %v560 = vstv %s559
    %v561 = vmul.f32 %v88, %v560
    %v562 = vmul.f32 %v89, %v560
    %v563 = vadd.f32 %v557, %v561
    %v564 = vadd.f32 %v558, %v562
    %s565 = sld [smem:[#allocation3 + $0x2b]]
    %v566 = vstv %s565
    %v567 = vmul.f32 %v91, %v566
    %v568 = vmul.f32 %v92, %v566
    %v569 = vadd.f32 %v563, %v567
    %v570 = vadd.f32 %v564, %v568
    %s571 = sld [smem:[#allocation3 + $0x2c]]
    %v572 = vstv %s571
    %v573 = vmul.f32 %v94, %v572
    %v574 = vmul.f32 %v95, %v572
    %v575 = vadd.f32 %v569, %v573
    %v576 = vadd.f32 %v570, %v574
    %v577 = vsel %vm148, %v576, 0.0
    %v578 = vadd.f32 %v575, %v577
    %579 = vadd.xlane.f32.xlu0 %v578
    %v580 = vpop.xlane.xlu0 %579
    %v581 = vrot.slane %v580, 4
    %v582 = vadd.f32 %v580, %v581
    %v583 = vrot.slane %v582, 2
    %v584 = vadd.f32 %v582, %v583
    %v585 = vrot.slane %v584, 1
    %v586 = vadd.f32 %v584, %v585
    %s587 = vtos %v586
    %v588 = vstv %s587
    %v589 = vmul.f32 %v588, 0.000739645
    %v590 = vsub.f32 %v575, %v589
    %v591 = vsub.f32 %v576, %v589
    %v592 = vmul.f32 %v590, %v590
    %v593 = vmul.f32 %v591, %v591
    %v594 = vsel %vm148, %v593, 0.0
    %v595 = vadd.f32 %v592, %v594
    %596 = vadd.xlane.f32.xlu0 %v595
    %v597 = vpop.xlane.xlu0 %596
    %v598 = vrot.slane %v597, 4
    %v599 = vadd.f32 %v597, %v598
    %v600 = vrot.slane %v599, 2
    %v601 = vadd.f32 %v599, %v600
    %v602 = vrot.slane %v601, 1
    %v603 = vadd.f32 %v601, %v602
    %s604 = vtos %v603
    %v605 = vstv %s604
    %v606 = vmul.f32 %v605, 0.000739645
    %s607 = sld [smem:[#allocation6 + $0x4]]
    %v608 = vadd.f32 %v606, 1e-05
    %v609 = vrsqrt.pop %v608
    %v610 = vstv %s607
    %v611 = vmul.f32 %v610, %v609
    %s612 = sld [smem:[#allocation8 + $0x4]]
    %v613 = vmul.f32 %v589, %v611
    %v614 = vstv %s612
    %v615 = vsub.f32 %v614, %v613
    %v616 = vmul.f32 %v575, %v611
    %v617 = vmul.f32 %v576, %v611
    %v618 = vadd.f32 %v616, %v615
    %v619 = vadd.f32 %v617, %v615
    %v620 = vmax.f32 %v618, 0.0
    %v621 = vmax.f32 %v619, 0.0
    %v622 = vrot.slane %v620, 4
    %v623 = vrot.slane %v621, 4
    %v624 = vmax.f32 %v620, %v622
    %v625 = vmax.f32 %v621, %v623
    %v626 = vrot.slane %v624, 6
    %v627 = vrot.slane %v625, 6
    %v628 = vmax.f32 %v624, %v626
    %v629 = vmax.f32 %v625, %v627
    %630 = vst [vmem:[#allocation2 + $0x40] sm:$0xff] %v628
    %631 = vst.msk [vmem:[#allocation2 + $0x48] sm:$0xff] %vm148, %v629
    %v632 = vld [vmem:[#allocation2] sm:$0xff]
    %v633 = vld [vmem:[#allocation2 + $0x8] sm:$0xff]
    %v634 = vld [vmem:[#allocation2 + $0x10] sm:$0xff]
    %v635 = vld [vmem:[#allocation2 + $0x18] sm:$0xff]
    %v636 = vld [vmem:[#allocation2 + $0x20] sm:$0xff]
    %v637 = vld [vmem:[#allocation2 + $0x28] sm:$0xff]
    %v638 = vld [vmem:[#allocation2 + $0x30] sm:$0xff]
    %v639 = vld [vmem:[#allocation2 + $0x38] sm:$0xff]
    %v640 = vld [vmem:[#allocation2 + $0x40] sm:$0xff]
    %v641 = vld [vmem:[#allocation2 + $0x48] sm:$0xff]
    %v642 = vld [vmem:[%s4] sm:$0xff]
    %v643 = vld [vmem:[%s4 + $0x8] sm:$0xff]
    %v644 = vld [vmem:[%s4 + $0x10] sm:$0xff]
    %v645 = vld [vmem:[%s4 + $0x18] sm:$0xff]
    %v646 = vld [vmem:[%s4 + $0x20] sm:$0xff]
    %v647 = vld [vmem:[%s4 + $0x28] sm:$0xff]
    %v648 = vld [vmem:[%s4 + $0x30] sm:$0xff]
    %v649 = vld [vmem:[%s4 + $0x38] sm:$0xff]
    %v650 = vld [vmem:[%s4 + $0x40] sm:$0xff]
    %v651 = vld [vmem:[%s4 + $0x48] sm:$0xff]
    %v652 = vld [vmem:[%s4 + $0x50] sm:$0xff]
    %v653 = vld [vmem:[%s4 + $0x58] sm:$0xff]
    %v654 = vld [vmem:[%s4 + $0x60] sm:$0xff]
    %v655 = vld [vmem:[%s4 + $0x68] sm:$0xff]
    %v656 = vld [vmem:[%s4 + $0x70] sm:$0xff]
    %v657 = vld [vmem:[%s4 + $0x78] sm:$0xff]
    %v658 = vld [vmem:[%s4 + $0x80] sm:$0xff]
    %v659 = vld [vmem:[%s4 + $0x88] sm:$0xff]
    %v660 = vld [vmem:[%s4 + $0x90] sm:$0xff]
    %v661 = vld [vmem:[%s4 + $0x98] sm:$0xff]
    %v662 = vld [vmem:[%s4 + $0xa0] sm:$0xff]
    %v663 = vld [vmem:[%s4 + $0xa8] sm:$0xff]
    %v664 = vld [vmem:[%s4 + $0xb0] sm:$0xff]
    %v665 = vld [vmem:[%s4 + $0xb8] sm:$0xff]
    %v666 = vld [vmem:[%s4 + $0xc0] sm:$0xff]
    %v667 = vld [vmem:[%s4 + $0xc8] sm:$0xff]
    %v668 = vld [vmem:[%s4 + $0xd0] sm:$0xff]
    %v669 = vld [vmem:[%s4 + $0xd8] sm:$0xff]
    %v670 = vld [vmem:[%s4 + $0xe0] sm:$0xff]
    %v671 = vld [vmem:[%s4 + $0xe8] sm:$0xff]
    %v672 = vld [vmem:[%s4 + $0xf0] sm:$0xff]
    %v673 = vld [vmem:[%s4 + $0xf8] sm:$0xff]
    %v674 = vld [vmem:[%s4 + $0x100] sm:$0xff]
    %v675 = vld [vmem:[%s4 + $0x108] sm:$0xff]
    %v676 = vld [vmem:[%s4 + $0x110] sm:$0xff]
    %v677 = vld [vmem:[%s4 + $0x118] sm:$0xff]
    %v678 = vld [vmem:[%s4 + $0x120] sm:$0xff]
    %v679 = vld [vmem:[%s4 + $0x128] sm:$0xff]
    %v680 = vld [vmem:[%s4 + $0x130] sm:$0xff]
    %v681 = vld [vmem:[%s4 + $0x138] sm:$0xff]
    %v682 = vld [vmem:[%s4 + $0x140] sm:$0xff]
    %v683 = vld [vmem:[%s4 + $0x148] sm:$0xff]
    %v684 = vld [vmem:[%s4 + $0x150] sm:$0xff]
    %v685 = vld [vmem:[%s4 + $0x158] sm:$0xff]
    %v686 = vld [vmem:[%s4 + $0x160] sm:$0xff]
    %v687 = vld [vmem:[%s4 + $0x168] sm:$0xff]
    %v688 = vld [vmem:[%s4 + $0x170] sm:$0xff]
    %v689 = vld [vmem:[%s4 + $0x178] sm:$0xff]
    %v690 = vld [vmem:[%s4 + $0x180] sm:$0xff]
    %v691 = vld [vmem:[%s4 + $0x188] sm:$0xff]
    %v692 = vld [vmem:[%s4 + $0x190] sm:$0xff]
    %v693 = vld [vmem:[%s4 + $0x198] sm:$0xff]
    %v694 = vld [vmem:[%s4 + $0x1a0] sm:$0xff]
    %v695 = vld [vmem:[%s4 + $0x1a8] sm:$0xff]
    %v696 = vld [vmem:[%s4 + $0x1b0] sm:$0xff]
    %v697 = vld [vmem:[%s4 + $0x1b8] sm:$0xff]
    %v698 = vld [vmem:[%s4 + $0x1c0] sm:$0xff]
    %v699 = vld [vmem:[%s4 + $0x1c8] sm:$0xff]
    %v700 = vld [vmem:[%s4 + $0x1d0] sm:$0xff]
    %v701 = vld [vmem:[%s4 + $0x1d8] sm:$0xff]
    %v702 = vld [vmem:[%s4 + $0x1e0] sm:$0xff]
    %v703 = vld [vmem:[%s4 + $0x1e8] sm:$0xff]
    %v704 = vld [vmem:[%s4 + $0x1f0] sm:$0xff]
    %v705 = vld [vmem:[%s4 + $0x1f8] sm:$0xff]
    %v706 = vld [vmem:[%s4 + $0x200] sm:$0xff]
    %v707 = vld [vmem:[%s4 + $0x208] sm:$0xff]
    %v708 = vld [vmem:[%s4 + $0x210] sm:$0xff]
    %v709 = vld [vmem:[%s4 + $0x218] sm:$0xff]
    %v710 = vld [vmem:[%s4 + $0x220] sm:$0xff]
    %v711 = vld [vmem:[%s4 + $0x228] sm:$0xff]
    %v712 = vld [vmem:[%s4 + $0x230] sm:$0xff]
    %v713 = vld [vmem:[%s4 + $0x238] sm:$0xff]
    %v714 = vld [vmem:[%s4 + $0x240] sm:$0xff]
    %v715 = vld [vmem:[%s4 + $0x248] sm:$0xff]
    %v716 = vld [vmem:[%s4 + $0x250] sm:$0xff]
    %v717 = vld [vmem:[%s4 + $0x258] sm:$0xff]
    %v718 = vld [vmem:[%s4 + $0x260] sm:$0xff]
    %v719 = vld [vmem:[%s4 + $0x268] sm:$0xff]
    %v720 = vld [vmem:[%s4 + $0x270] sm:$0xff]
    %v721 = vld [vmem:[%s4 + $0x278] sm:$0xff]
    %v722 = vld [vmem:[%s4 + $0x280] sm:$0xff]
    %v723 = vld [vmem:[%s4 + $0x288] sm:$0xff]
    %v724 = vld [vmem:[%s4 + $0x290] sm:$0xff]
    %v725 = vld [vmem:[%s4 + $0x298] sm:$0xff]
    %v726 = vld [vmem:[%s4 + $0x2a0] sm:$0xff]
    %v727 = vld [vmem:[%s4 + $0x2a8] sm:$0xff]
    %v728 = vld [vmem:[%s4 + $0x2b0] sm:$0xff]
    %v729 = vld [vmem:[%s4 + $0x2b8] sm:$0xff]
    %v730 = vld [vmem:[%s4 + $0x2c0] sm:$0xff]
    %v731 = vld [vmem:[%s4 + $0x2c8] sm:$0xff]
    %v732 = vld [vmem:[%s4 + $0x2d0] sm:$0xff]
    %v733 = vld [vmem:[%s4 + $0x2d8] sm:$0xff]
    %v734 = vld [vmem:[%s4 + $0x2e0] sm:$0xff]
    %v735 = vld [vmem:[%s4 + $0x2e8] sm:$0xff]
    %v736 = vld [vmem:[%s4 + $0x2f0] sm:$0xff]
    %v737 = vld [vmem:[%s4 + $0x2f8] sm:$0xff]
    %v738 = vld [vmem:[%s4 + $0x300] sm:$0xff]
    %v739 = vld [vmem:[%s4 + $0x308] sm:$0xff]
    %v740 = vld [vmem:[%s4 + $0x310] sm:$0xff]
    %v741 = vld [vmem:[%s4 + $0x318] sm:$0xff]
    %v742 = vld [vmem:[%s4 + $0x320] sm:$0xff]
    %v743 = vld [vmem:[%s4 + $0x328] sm:$0xff]
    %v744 = vld [vmem:[%s4 + $0x330] sm:$0xff]
    %v745 = vld [vmem:[%s4 + $0x338] sm:$0xff]
    %v746 = vld [vmem:[%s4 + $0x340] sm:$0xff]
    %v747 = vld [vmem:[%s4 + $0x348] sm:$0xff]
    %v748 = vld [vmem:[%s4 + $0x350] sm:$0xff]
    %v749 = vld [vmem:[%s4 + $0x358] sm:$0xff]
    %v750 = vld [vmem:[%s4 + $0x360] sm:$0xff]
    %v751 = vld [vmem:[%s4 + $0x368] sm:$0xff]
    %v752 = vld [vmem:[%s4 + $0x370] sm:$0xff]
    %v753 = vld [vmem:[%s4 + $0x378] sm:$0xff]
    %v754 = vld [vmem:[%s4 + $0x380] sm:$0xff]
    %v755 = vld [vmem:[%s4 + $0x388] sm:$0xff]
    %v756 = vld [vmem:[%s4 + $0x390] sm:$0xff]
    %v757 = vld [vmem:[%s4 + $0x398] sm:$0xff]
    %v758 = vld [vmem:[%s4 + $0x3a0] sm:$0xff]
    %v759 = vld [vmem:[%s4 + $0x3a8] sm:$0xff]
    %v760 = vld [vmem:[%s4 + $0x3b0] sm:$0xff]
    %v761 = vld [vmem:[%s4 + $0x3b8] sm:$0xff]
    %v762 = vld [vmem:[%s4 + $0x3c0] sm:$0xff]
    %v763 = vld [vmem:[%s4 + $0x3c8] sm:$0xff]
    %v764 = vld [vmem:[%s4 + $0x3d0] sm:$0xff]
    %v765 = vld [vmem:[%s4 + $0x3d8] sm:$0xff]
    %v766 = vld [vmem:[%s4 + $0x3e0] sm:$0xff]
    %v767 = vld [vmem:[%s4 + $0x3e8] sm:$0xff]
    %v768 = vld [vmem:[%s4 + $0x3f0] sm:$0xff]
    %v769 = vld [vmem:[%s4 + $0x3f8] sm:$0xff]
    %v770 = vld [vmem:[%s4 + $0x400] sm:$0xff]
    %v771 = vld [vmem:[%s4 + $0x408] sm:$0xff]
    %v772 = vld [vmem:[%s4 + $0x410] sm:$0xff]
    %v773 = vld [vmem:[%s4 + $0x418] sm:$0xff]
    %v774 = vld [vmem:[%s4 + $0x420] sm:$0xff]
    %v775 = vld [vmem:[%s4 + $0x428] sm:$0xff]
    %v776 = vld [vmem:[%s4 + $0x430] sm:$0xff]
    %v777 = vld [vmem:[%s4 + $0x438] sm:$0xff]
    %v778 = vld [vmem:[%s4 + $0x440] sm:$0xff]
    %v779 = vld [vmem:[%s4 + $0x448] sm:$0xff]
    %v780 = vld [vmem:[%s4 + $0x450] sm:$0xff]
    %v781 = vld [vmem:[%s4 + $0x458] sm:$0xff]
    %v782 = vld [vmem:[%s4 + $0x460] sm:$0xff]
    %v783 = vld [vmem:[%s4 + $0x468] sm:$0xff]
    %v784 = vld [vmem:[%s4 + $0x470] sm:$0xff]
    %v785 = vld [vmem:[%s4 + $0x478] sm:$0xff]
    %v786 = vld [vmem:[%s4 + $0x480] sm:$0xff]
    %v787 = vld [vmem:[%s4 + $0x488] sm:$0xff]
    %v788 = vld [vmem:[%s4 + $0x490] sm:$0xff]
    %v789 = vld [vmem:[%s4 + $0x498] sm:$0xff]
    %v790 = vld [vmem:[%s4 + $0x4a0] sm:$0xff]
    %v791 = vld [vmem:[%s4 + $0x4a8] sm:$0xff]
    %v792 = vld [vmem:[%s4 + $0x4b0] sm:$0xff]
    %v793 = vld [vmem:[%s4 + $0x4b8] sm:$0xff]
    %v794 = vld [vmem:[%s4 + $0x4c0] sm:$0xff]
    %v795 = vld [vmem:[%s4 + $0x4c8] sm:$0xff]
    %v796 = vld [vmem:[%s4 + $0x4d0] sm:$0xff]
    %v797 = vld [vmem:[%s4 + $0x4d8] sm:$0xff]
    %v798 = vld [vmem:[%s4 + $0x4e0] sm:$0xff]
    %v799 = vld [vmem:[%s4 + $0x4e8] sm:$0xff]
    %v800 = vld [vmem:[%s4 + $0x4f0] sm:$0xff]
    %v801 = vld [vmem:[%s4 + $0x4f8] sm:$0xff]
    %802 = vmatprep.subr.mxu0 0.0
    %803 = vmatpush1.msra.mxu0 %v642
    %804 = vmatprep.subr.mxu0 0.0
    %805 = vmatpush1.msra.mxu0 %v643
    %806 = vmatprep.subr.mxu0 0.0
    %807 = vmatpush1.msra.mxu0 %v644
    %808 = vmatprep.subr.mxu0 0.0
    %809 = vmatpush1.msra.mxu0 %v645
    %810 = vmatprep.subr.mxu0 0.0
    %811 = vmatpush1.msra.mxu0 %v646
    %812 = vmatprep.subr.mxu0 0.0
    %813 = vmatpush1.msra.mxu0 %v647
    %814 = vmatprep.subr.mxu0 0.0
    %815 = vmatpush1.msra.mxu0 %v648
    %816 = vmatprep.subr.mxu0 0.0
    %817 = vmatpush1.msra.mxu0 %v649
    %818 = vmatprep.subr.mxu0 0.0
    %819 = vmatpush1.msra.mxu0 %v650
    %820 = vmatprep.subr.mxu0 0.0
    %821 = vmatpush1.msra.mxu0 %v651
    %822 = vmatprep.subr.mxu0 0.0
    %823 = vmatpush1.msra.mxu0 %v652
    %824 = vmatprep.subr.mxu0 0.0
    %825 = vmatpush1.msra.mxu0 %v653
    %826 = vmatprep.subr.mxu0 0.0
    %827 = vmatpush1.msra.mxu0 %v654
    %828 = vmatprep.subr.mxu0 0.0
    %829 = vmatpush1.msra.mxu0 %v655
    %830 = vmatprep.subr.mxu0 0.0
    %831 = vmatpush1.msra.mxu0 %v656
    %832 = vmatprep.subr.mxu0 0.0
    %833 = vmatpush1.msra.mxu0 %v657
    %834 = vmatprep.subr.mxu0 0.0
    %835 = vmatpush1.msra.mxu0 %v658
    %836 = vmatprep.subr.mxu0 0.0
    %837 = vmatpush1.msra.mxu0 %v659
    %838 = vmatprep.subr.mxu0 0.0
    %839 = vmatpush1.msra.mxu0 %v660
    %840 = vmatprep.subr.mxu0 0.0
    %841 = vmatpush1.msra.mxu0 %v661
    %842 = vmatprep.subr.mxu0 0.0
    %843 = vmatpush1.msra.mxu0 %v662
    %844 = vmatprep.subr.mxu0 0.0
    %845 = vmatpush1.msra.mxu0 %v663
    %846 = vmatprep.subr.mxu0 0.0
    %847 = vmatpush1.msra.mxu0 %v664
    %848 = vmatprep.subr.mxu0 0.0
    %849 = vmatpush1.msra.mxu0 %v665
    %850 = vmatprep.subr.mxu0 0.0
    %851 = vmatpush1.msra.mxu0 %v666
    %852 = vmatprep.subr.mxu0 0.0
    %853 = vmatpush1.msra.mxu0 %v667
    %854 = vmatprep.subr.mxu0 0.0
    %855 = vmatpush1.msra.mxu0 %v668
    %856 = vmatprep.subr.mxu0 0.0
    %857 = vmatpush1.msra.mxu0 %v669
    %858 = vmatprep.subr.mxu0 0.0
    %859 = vmatpush1.msra.mxu0 %v670
    %860 = vmatprep.subr.mxu0 0.0
    %861 = vmatpush1.msra.mxu0 %v671
    %862 = vmatprep.subr.mxu0 0.0
    %863 = vmatpush1.msra.mxu0 %v672
    %864 = vmatprep.subr.mxu0 0.0
    %865 = vmatpush1.msra.mxu0 %v673
    %866 = vmatprep.mubr.f32.mxu0 %v633
    %867 = vmatmul.mubr.f32.gmra.mrb[0].mxu0 %v632
    %v868 = vpop.f32.mrb[0].mxu0
    %v869 = vadd.f32 0.0, %v868
    %v870 = vpop.f32.mrb[0].mxu0
    %871 = vdwg.mxu0
    %872 = vmatprep.subr.mxu0 0.0
    %873 = vmatpush1.msra.mxu0 %v674
    %874 = vmatprep.subr.mxu0 0.0
    %875 = vmatpush1.msra.mxu0 %v675
    %876 = vmatprep.subr.mxu0 0.0
    %877 = vmatpush1.msra.mxu0 %v676
    %878 = vmatprep.subr.mxu0 0.0
    %879 = vmatpush1.msra.mxu0 %v677
    %880 = vmatprep.subr.mxu0 0.0
    %881 = vmatpush1.msra.mxu0 %v678
    %882 = vmatprep.subr.mxu0 0.0
    %883 = vmatpush1.msra.mxu0 %v679
    %884 = vmatprep.subr.mxu0 0.0
    %885 = vmatpush1.msra.mxu0 %v680
    %886 = vmatprep.subr.mxu0 0.0
    %887 = vmatpush1.msra.mxu0 %v681
    %888 = vmatprep.subr.mxu0 0.0
    %889 = vmatpush1.msra.mxu0 %v682
    %890 = vmatprep.subr.mxu0 0.0
    %891 = vmatpush1.msra.mxu0 %v683
    %892 = vmatprep.subr.mxu0 0.0
    %893 = vmatpush1.msra.mxu0 %v684
    %894 = vmatprep.subr.mxu0 0.0
    %895 = vmatpush1.msra.mxu0 %v685
    %896 = vmatprep.subr.mxu0 0.0
    %897 = vmatpush1.msra.mxu0 %v686
    %898 = vmatprep.subr.mxu0 0.0
    %899 = vmatpush1.msra.mxu0 %v687
    %900 = vmatprep.subr.mxu0 0.0
    %901 = vmatpush1.msra.mxu0 %v688
    %902 = vmatprep.subr.mxu0 0.0
    %903 = vmatpush1.msra.mxu0 %v689
    %904 = vmatprep.subr.mxu0 0.0
    %905 = vmatpush1.msra.mxu0 %v690
    %906 = vmatprep.subr.mxu0 0.0
    %907 = vmatpush1.msra.mxu0 %v691
    %908 = vmatprep.subr.mxu0 0.0
    %909 = vmatpush1.msra.mxu0 %v692
    %910 = vmatprep.subr.mxu0 0.0
    %911 = vmatpush1.msra.mxu0 %v693
    %912 = vmatprep.subr.mxu0 0.0
    %913 = vmatpush1.msra.mxu0 %v694
    %914 = vmatprep.subr.mxu0 0.0
    %915 = vmatpush1.msra.mxu0 %v695
    %916 = vmatprep.subr.mxu0 0.0
    %917 = vmatpush1.msra.mxu0 %v696
    %918 = vmatprep.subr.mxu0 0.0
    %919 = vmatpush1.msra.mxu0 %v697
    %920 = vmatprep.subr.mxu0 0.0
    %921 = vmatpush1.msra.mxu0 %v698
    %922 = vmatprep.subr.mxu0 0.0
    %923 = vmatpush1.msra.mxu0 %v699
    %924 = vmatprep.subr.mxu0 0.0
    %925 = vmatpush1.msra.mxu0 %v700
    %926 = vmatprep.subr.mxu0 0.0
    %927 = vmatpush1.msra.mxu0 %v701
    %928 = vmatprep.subr.mxu0 0.0
    %929 = vmatpush1.msra.mxu0 %v702
    %930 = vmatprep.subr.mxu0 0.0
    %931 = vmatpush1.msra.mxu0 %v703
    %932 = vmatprep.subr.mxu0 0.0
    %933 = vmatpush1.msra.mxu0 %v704
    %934 = vmatprep.subr.mxu0 0.0
    %935 = vmatpush1.msra.mxu0 %v705
    %936 = vmatprep.mubr.f32.mxu0 %v635
    %937 = vmatmul.mubr.f32.gmra.mrb[0].mxu0 %v634
    %v938 = vpop.f32.mrb[0].mxu0
    %v939 = vadd.f32 %v869, %v938
    %v940 = vpop.f32.mrb[0].mxu0
    %941 = vdwg.mxu0
    %942 = vmatprep.subr.mxu0 0.0
    %943 = vmatpush1.msra.mxu0 %v706
    %944 = vmatprep.subr.mxu0 0.0
    %945 = vmatpush1.msra.mxu0 %v707
    %946 = vmatprep.subr.mxu0 0.0
    %947 = vmatpush1.msra.mxu0 %v708
    %948 = vmatprep.subr.mxu0 0.0
    %949 = vmatpush1.msra.mxu0 %v709
    %950 = vmatprep.subr.mxu0 0.0
    %951 = vmatpush1.msra.mxu0 %v710
    %952 = vmatprep.subr.mxu0 0.0
    %953 = vmatpush1.msra.mxu0 %v711
    %954 = vmatprep.subr.mxu0 0.0
    %955 = vmatpush1.msra.mxu0 %v712
    %956 = vmatprep.subr.mxu0 0.0
    %957 = vmatpush1.msra.mxu0 %v713
    %958 = vmatprep.subr.mxu0 0.0
    %959 = vmatpush1.msra.mxu0 %v714
    %960 = vmatprep.subr.mxu0 0.0
    %961 = vmatpush1.msra.mxu0 %v715
    %962 = vmatprep.subr.mxu0 0.0
    %963 = vmatpush1.msra.mxu0 %v716
    %964 = vmatprep.subr.mxu0 0.0
    %965 = vmatpush1.msra.mxu0 %v717
    %966 = vmatprep.subr.mxu0 0.0
    %967 = vmatpush1.msra.mxu0 %v718
    %968 = vmatprep.subr.mxu0 0.0
    %969 = vmatpush1.msra.mxu0 %v719
    %970 = vmatprep.subr.mxu0 0.0
    %971 = vmatpush1.msra.mxu0 %v720
    %972 = vmatprep.subr.mxu0 0.0
    %973 = vmatpush1.msra.mxu0 %v721
    %974 = vmatprep.subr.mxu0 0.0
    %975 = vmatpush1.msra.mxu0 %v722
    %976 = vmatprep.subr.mxu0 0.0
    %977 = vmatpush1.msra.mxu0 %v723
    %978 = vmatprep.subr.mxu0 0.0
    %979 = vmatpush1.msra.mxu0 %v724
    %980 = vmatprep.subr.mxu0 0.0
    %981 = vmatpush1.msra.mxu0 %v725
    %982 = vmatprep.subr.mxu0 0.0
    %983 = vmatpush1.msra.mxu0 %v726
    %984 = vmatprep.subr.mxu0 0.0
    %985 = vmatpush1.msra.mxu0 %v727
    %986 = vmatprep.subr.mxu0 0.0
    %987 = vmatpush1.msra.mxu0 %v728
    %988 = vmatprep.subr.mxu0 0.0
    %989 = vmatpush1.msra.mxu0 %v729
    %990 = vmatprep.subr.mxu0 0.0
    %991 = vmatpush1.msra.mxu0 %v730
    %992 = vmatprep.subr.mxu0 0.0
    %993 = vmatpush1.msra.mxu0 %v731
    %994 = vmatprep.subr.mxu0 0.0
    %995 = vmatpush1.msra.mxu0 %v732
    %996 = vmatprep.subr.mxu0 0.0
    %997 = vmatpush1.msra.mxu0 %v733
    %998 = vmatprep.subr.mxu0 0.0
    %999 = vmatpush1.msra.mxu0 %v734
    %1000 = vmatprep.subr.mxu0 0.0
    %1001 = vmatpush1.msra.mxu0 %v735
    %1002 = vmatprep.subr.mxu0 0.0
    %1003 = vmatpush1.msra.mxu0 %v736
    %1004 = vmatprep.subr.mxu0 0.0
    %1005 = vmatpush1.msra.mxu0 %v737
    %1006 = vmatprep.mubr.f32.mxu0 %v637
    %1007 = vmatmul.mubr.f32.gmra.mrb[0].mxu0 %v636
    %v1008 = vpop.f32.mrb[0].mxu0
    %v1009 = vadd.f32 %v939, %v1008
    %v1010 = vpop.f32.mrb[0].mxu0
    %1011 = vdwg.mxu0
    %1012 = vmatprep.subr.mxu0 0.0
    %1013 = vmatpush1.msra.mxu0 %v738
    %1014 = vmatprep.subr.mxu0 0.0
    %1015 = vmatpush1.msra.mxu0 %v739
    %1016 = vmatprep.subr.mxu0 0.0
    %1017 = vmatpush1.msra.mxu0 %v740
    %1018 = vmatprep.subr.mxu0 0.0
    %1019 = vmatpush1.msra.mxu0 %v741
    %1020 = vmatprep.subr.mxu0 0.0
    %1021 = vmatpush1.msra.mxu0 %v742
    %1022 = vmatprep.subr.mxu0 0.0
    %1023 = vmatpush1.msra.mxu0 %v743
    %1024 = vmatprep.subr.mxu0 0.0
    %1025 = vmatpush1.msra.mxu0 %v744
    %1026 = vmatprep.subr.mxu0 0.0
    %1027 = vmatpush1.msra.mxu0 %v745
    %1028 = vmatprep.subr.mxu0 0.0
    %1029 = vmatpush1.msra.mxu0 %v746
    %1030 = vmatprep.subr.mxu0 0.0
    %1031 = vmatpush1.msra.mxu0 %v747
    %1032 = vmatprep.subr.mxu0 0.0
    %1033 = vmatpush1.msra.mxu0 %v748
    %1034 = vmatprep.subr.mxu0 0.0
    %1035 = vmatpush1.msra.mxu0 %v749
    %1036 = vmatprep.subr.mxu0 0.0
    %1037 = vmatpush1.msra.mxu0 %v750
    %1038 = vmatprep.subr.mxu0 0.0
    %1039 = vmatpush1.msra.mxu0 %v751
    %1040 = vmatprep.subr.mxu0 0.0
    %1041 = vmatpush1.msra.mxu0 %v752
    %1042 = vmatprep.subr.mxu0 0.0
    %1043 = vmatpush1.msra.mxu0 %v753
    %1044 = vmatprep.subr.mxu0 0.0
    %1045 = vmatpush1.msra.mxu0 %v754
    %1046 = vmatprep.subr.mxu0 0.0
    %1047 = vmatpush1.msra.mxu0 %v755
    %1048 = vmatprep.subr.mxu0 0.0
    %1049 = vmatpush1.msra.mxu0 %v756
    %1050 = vmatprep.subr.mxu0 0.0
    %1051 = vmatpush1.msra.mxu0 %v757
    %1052 = vmatprep.subr.mxu0 0.0
    %1053 = vmatpush1.msra.mxu0 %v758
    %1054 = vmatprep.subr.mxu0 0.0
    %1055 = vmatpush1.msra.mxu0 %v759
    %1056 = vmatprep.subr.mxu0 0.0
    %1057 = vmatpush1.msra.mxu0 %v760
    %1058 = vmatprep.subr.mxu0 0.0
    %1059 = vmatpush1.msra.mxu0 %v761
    %1060 = vmatprep.subr.mxu0 0.0
    %1061 = vmatpush1.msra.mxu0 %v762
    %1062 = vmatprep.subr.mxu0 0.0
    %1063 = vmatpush1.msra.mxu0 %v763
    %1064 = vmatprep.subr.mxu0 0.0
    %1065 = vmatpush1.msra.mxu0 %v764
    %1066 = vmatprep.subr.mxu0 0.0
    %1067 = vmatpush1.msra.mxu0 %v765
    %1068 = vmatprep.subr.mxu0 0.0
    %1069 = vmatpush1.msra.mxu0 %v766
    %1070 = vmatprep.subr.mxu0 0.0
    %1071 = vmatpush1.msra.mxu0 %v767
    %1072 = vmatprep.subr.mxu0 0.0
    %1073 = vmatpush1.msra.mxu0 %v768
    %1074 = vmatprep.subr.mxu0 0.0
    %1075 = vmatpush1.msra.mxu0 %v769
    %1076 = vmatprep.mubr.f32.mxu0 %v639
    %1077 = vmatmul.mubr.f32.gmra.mrb[0].mxu0 %v638
    %v1078 = vpop.f32.mrb[0].mxu0
    %v1079 = vadd.f32 %v1009, %v1078
    %v1080 = vpop.f32.mrb[0].mxu0
    %1081 = vdwg.mxu0
    %1082 = vmatprep.subr.mxu0 0.0
    %1083 = vmatpush1.msra.mxu0 %v770
    %1084 = vmatprep.subr.mxu0 0.0
    %1085 = vmatpush1.msra.mxu0 %v771
    %1086 = vmatprep.subr.mxu0 0.0
    %1087 = vmatpush1.msra.mxu0 %v772
    %1088 = vmatprep.subr.mxu0 0.0
    %1089 = vmatpush1.msra.mxu0 %v773
    %1090 = vmatprep.subr.mxu0 0.0
    %1091 = vmatpush1.msra.mxu0 %v774
    %1092 = vmatprep.subr.mxu0 0.0
    %1093 = vmatpush1.msra.mxu0 %v775
    %1094 = vmatprep.subr.mxu0 0.0
    %1095 = vmatpush1.msra.mxu0 %v776
    %1096 = vmatprep.subr.mxu0 0.0
    %1097 = vmatpush1.msra.mxu0 %v777
    %1098 = vmatprep.subr.mxu0 0.0
    %1099 = vmatpush1.msra.mxu0 %v778
    %1100 = vmatprep.subr.mxu0 0.0
    %1101 = vmatpush1.msra.mxu0 %v779
    %1102 = vmatprep.subr.mxu0 0.0
    %1103 = vmatpush1.msra.mxu0 %v780
    %1104 = vmatprep.subr.mxu0 0.0
    %1105 = vmatpush1.msra.mxu0 %v781
    %1106 = vmatprep.subr.mxu0 0.0
    %1107 = vmatpush1.msra.mxu0 %v782
    %1108 = vmatprep.subr.mxu0 0.0
    %1109 = vmatpush1.msra.mxu0 %v783
    %1110 = vmatprep.subr.mxu0 0.0
    %1111 = vmatpush1.msra.mxu0 %v784
    %1112 = vmatprep.subr.mxu0 0.0
    %1113 = vmatpush1.msra.mxu0 %v785
    %1114 = vmatprep.subr.mxu0 0.0
    %1115 = vmatpush1.msra.mxu0 %v786
    %1116 = vmatprep.subr.mxu0 0.0
    %1117 = vmatpush1.msra.mxu0 %v787
    %1118 = vmatprep.subr.mxu0 0.0
    %1119 = vmatpush1.msra.mxu0 %v788
    %1120 = vmatprep.subr.mxu0 0.0
    %1121 = vmatpush1.msra.mxu0 %v789
    %1122 = vmatprep.subr.mxu0 0.0
    %1123 = vmatpush1.msra.mxu0 %v790
    %1124 = vmatprep.subr.mxu0 0.0
    %1125 = vmatpush1.msra.mxu0 %v791
    %1126 = vmatprep.subr.mxu0 0.0
    %1127 = vmatpush1.msra.mxu0 %v792
    %1128 = vmatprep.subr.mxu0 0.0
    %1129 = vmatpush1.msra.mxu0 %v793
    %1130 = vmatprep.subr.mxu0 0.0
    %1131 = vmatpush1.msra.mxu0 %v794
    %1132 = vmatprep.subr.mxu0 0.0
    %1133 = vmatpush1.msra.mxu0 %v795
    %1134 = vmatprep.subr.mxu0 0.0
    %1135 = vmatpush1.msra.mxu0 %v796
    %1136 = vmatprep.subr.mxu0 0.0
    %1137 = vmatpush1.msra.mxu0 %v797
    %1138 = vmatprep.subr.mxu0 0.0
    %1139 = vmatpush1.msra.mxu0 %v798
    %1140 = vmatprep.subr.mxu0 0.0
    %1141 = vmatpush1.msra.mxu0 %v799
    %1142 = vmatprep.subr.mxu0 0.0
    %1143 = vmatpush1.msra.mxu0 %v800
    %1144 = vmatprep.subr.mxu0 0.0
    %1145 = vmatpush1.msra.mxu0 %v801
    %1146 = vmatprep.mubr.f32.mxu0 %v641
    %1147 = vmatmul.mubr.f32.gmra.mrb[0].mxu0 %v640
    %v1148 = vpop.f32.mrb[0].mxu0
    %v1149 = vadd.f32 %v1079, %v1148
    %v1150 = vpop.f32.mrb[0].mxu0
    %1151 = vdwg.mxu0
    %v1152 = vld [vmem:[%s5] sm:$0x1]
    %v1154 = vlaneseq
    %v1155 = vshrl.u32 %v1154, 7
    %v1156 = vsub.s32 0, %v1155
    %v1157 = vrot.slane %v1152, %v1156
    %v1159 = vadd.f32 %v1149, %v1157
    %vm1160 = vcmask 74752
    %1161 = vst.msk [vmem:[#allocation9] sm:$0x3] %vm1160, %v1159
    // Predicated region
    $region38: #{netbn_forward.1} parent=1 // pred_check
      _
    $region39: #{netbn_forward.1} parent=1 // pred_check_branch
      %1163 = sbr.rel (0) target = $region41
    $region40: #{netbn_forward.1} parent=1 // pred_region
      %s1165 = ssub.s32 32, 32
      %1166 = vsyncadd [#allocation4], %s1165
      %s1168 = sshll.u32 [#allocation9], 4
      %s1169 = int_to_ptr.vmem [resolvable:$true] %s1168
      %1171 = dma.vmem_to_hbm [thread:$0]  %s1169, 32, %s6, [#allocation4]
    $region41: #{netbn_forward.1} parent=1 // pred_fallthru
      _
    // Predicated region
    $region42: #{netbn_forward.1} parent=1 // pred_check
      _
    $region43: #{netbn_forward.1} parent=1 // pred_check_branch
      %1173 = sbr.rel (0) target = $region45
    $region44: #{netbn_forward.1} parent=1 // pred_region
      %1174 = dma.done [#allocation4], 32
    $region45: #{netbn_forward.1} parent=1 // pred_fallthru
      _
    %1175 = vsyncpa [#allocation4], 1
    %1176 = vsyncpa [#allocation5], 1
    %1177 = vsyncpa [#allocation7], 1

</llo_original>
